<compile_context>
chip_gen: v5e
topology: v5e:2x2
jax: 0.10.0
libtpu: 0.0.40
codegen_flags: <defaults>
</compile_context>

<pallas_src>
import functools

import jax
import jax.numpy as jnp
from jax.experimental import pallas as pl
from jax.experimental.pallas import tpu as pltpu


def _vmem_limit_bytes():
    """Scoped-VMEM allowance derived from the chip (v5e/v6e: 128 MiB phys, v7x: 64 MiB)."""
    try:
        phys = int(pltpu.get_tpu_info().vmem_capacity_bytes)
    except Exception:
        phys = 64 * 1024 * 1024            # conservative fallback (v7x-sized)
    return int(min(phys * 3 // 4, 96 * 1024 * 1024))


def _pick_block_rows(P, cap_rows):
    """Largest divisor of P that fits the budget, prefers sublane-aligned blocks (x16 covers
    both bf16 and f32 packing) and leaves >= 2 grid tiles so the 'parallel' grid axis can be
    sharded across the two TensorCores on v7x."""
    cap = max(1, min(int(cap_rows), P))
    if P >= 16:
        cap = min(cap, P // 2)             # guarantee at least 2 tiles when possible
    for align in (16, 8, 1):
        for d in range(cap, 0, -1):
            if P % d == 0 and d % align == 0:
                return d
    return 1


# ----------------------------------------------------------------------------
# Pass 1: fused (ConvTranspose2d k=2 s=2  +  Conv2d 1x1) + bias + ReLU + concat
#         + per-tile BatchNorm partial statistics.
# ----------------------------------------------------------------------------
def _fused_conv_stats_kernel(up_ref, x_ref, wt_ref, wx_ref, b_ref, y_ref, stats_ref):
    # up_ref   : (rows, up_in)        input pixels (n,h,w) row-major, channels in lanes
    # x_ref    : (4, rows, x_in)      x sampled at output pixel (2h+kh, 2w+kw); slab = 2*kh+kw
    # wt_ref   : (4, up_in, up_out)   ConvTranspose2d tap weights, slab = 2*kh+kw
    # wx_ref   : (x_in, x_out)        1x1 conv weight (pre-transposed)
    # b_ref    : (1, 2*n_out) f32     concat bias, lane order (kw, [up | x])
    # y_ref    : (2, rows, 2*n_out)   one slab per kh, lane order (kw, [up | x])
    # stats_ref: (8, 2*n_out)  f32    row 0 = per-lane sum, row 1 = per-lane sum of squares
    two_n = y_ref.shape[-1]
    up2d = up_ref[...]
    wxm = wx_ref[...]
    bias = b_ref[...]

    tot_s = jnp.zeros((1, two_n), jnp.float32)
    tot_q = jnp.zeros((1, two_n), jnp.float32)
    for kh in range(2):                                  # static unroll over kernel-height taps
        pieces = []
        for kw in range(2):
            s = 2 * kh + kw
            # zero-free MXU matmuls, f32 accumulation
            pieces.append(jnp.dot(up2d, wt_ref[s], preferred_element_type=jnp.float32))
            pieces.append(jnp.dot(x_ref[s], wxm, preferred_element_type=jnp.float32))
        acc = jnp.concatenate(pieces, axis=-1)           # (rows, 2*n_out): [up0 | x0 | up1 | x1]
        acc = jnp.maximum(acc + bias, 0.0)               # fused bias + ReLU (f32)
        y_val = acc.astype(y_ref.dtype)
        y_ref[kh] = y_val                                # lane-dense store (lanes = 2*n_out)
        af = y_val.astype(jnp.float32)                   # stats of the *stored* values (keeps
        tot_s = tot_s + jnp.sum(af, axis=0, keepdims=True)   # bf16 path self-consistent)
        tot_q = tot_q + jnp.sum(af * af, axis=0, keepdims=True)

    # single packed per-tile stats store (row0=sum, row1=sumsq)
    stats_ref[...] = jnp.concatenate(
        [tot_s, tot_q, jnp.zeros((6, two_n), jnp.float32)], axis=0)


def _fused_convs_with_stats(up_cl, x_pk, wt_pk, wxm, bias_big, *, store_dtype):
    P, up_in = up_cl.shape
    x_in = x_pk.shape[-1]
    up_out = wt_pk.shape[-1]
    x_out = wxm.shape[-1]
    two_n = bias_big.shape[-1]
    isz = jnp.dtype(up_cl.dtype).itemsize
    osz = jnp.dtype(store_dtype).itemsize

    vmem_limit = _vmem_limit_bytes()
    # per-pixel-row working set: double-buffered inputs + outputs + f32 epilogue temporaries
    per_row = 2 * ((up_in + 4 * x_in) * isz + 2 * two_n * osz) + 16 * two_n
    weight_bytes = (4 * up_in * up_out + x_in * x_out) * isz
    budget = max(per_row, vmem_limit // 3 - 2 * weight_bytes)
    rows_blk = _pick_block_rows(P, budget // per_row)
    num_tiles = P // rows_blk

    return pl.pallas_call(
        _fused_conv_stats_kernel,
        out_shape=(
            jax.ShapeDtypeStruct((2, P, two_n), store_dtype),
            jax.ShapeDtypeStruct((num_tiles * 8, two_n), jnp.float32),
        ),
        grid=(num_tiles,),
        in_specs=[
            pl.BlockSpec((rows_blk, up_in), lambda i: (i, 0)),
            pl.BlockSpec((4, rows_blk, x_in), lambda i: (0, i, 0)),
            pl.BlockSpec((4, up_in, up_out), lambda i: (0, 0, 0)),
            pl.BlockSpec((x_in, x_out), lambda i: (0, 0)),
            pl.BlockSpec((1, two_n), lambda i: (0, 0)),
        ],
        out_specs=(
            pl.BlockSpec((2, rows_blk, two_n), lambda i: (0, i, 0)),
            pl.BlockSpec((8, two_n), lambda i: (i, 0)),
        ),
        compiler_params=pltpu.CompilerParams(
            dimension_semantics=("parallel",),
            vmem_limit_bytes=vmem_limit,
        ),
    )(up_cl, x_pk, wt_pk, wxm, bias_big)


# ----------------------------------------------------------------------------
# Full UNet_Up_Block forward (PyTorch semantics; BatchNorm training mode:
# batch statistics, biased variance, eps=1e-5).
# ----------------------------------------------------------------------------
def unet_up_block(up_p, x_p, params, eps=1e-5, compute_dtype=jnp.bfloat16,
                  out_dtype=jnp.float32):
    # up_p: (N, up_in, H, W)    x_p: (N, x_in, 2H, 2W)     (NCHW, like PyTorch)
    wt, bt, wx, bx, gamma, beta = params
    N, up_in, H, W = up_p.shape
    _, x_in, H2, W2 = x_p.shape
    assert H2 == 2 * H and W2 == 2 * W
    up_out = wt.shape[1]
    x_out = wx.shape[0]
    n_out = up_out + x_out
    two_n = 2 * n_out
    P = N * H * W
    cdt = jnp.dtype(compute_dtype)

    # ---- input layout: one XLA transpose (+ fused dtype cast) per input tensor ----------------
    # up: NCHW -> (pixel, up_in)
    up_cl = jnp.transpose(up_p, (0, 2, 3, 1)).reshape(P, up_in).astype(cdt)
    # x : NCHW -> (2*kh+kw, pixel, x_in); pixel = (n,h,w), value taken at (2h+kh, 2w+kw)
    x_pk = jnp.transpose(x_p.reshape(N, x_in, H, 2, W, 2), (3, 5, 0, 2, 4, 1))
    x_pk = x_pk.reshape(4, P, x_in).astype(cdt)

    # ---- weight packing (zero-free) ------------------------------------------------------------
    # ConvTranspose2d weight (up_in, up_out, kh, kw) -> (2*kh+kw, up_in, up_out)
    wt_pk = jnp.transpose(wt, (2, 3, 0, 1)).reshape(4, up_in, up_out).astype(cdt)
    # Conv2d 1x1 weight (x_out, x_in, 1, 1) -> (x_in, x_out)
    wxm = wx.reshape(x_out, x_in).T.astype(cdt)
    # bias for the concatenated channels, replicated over kw: lanes = (kw, [up | x])
    bias_big = jnp.tile(jnp.concatenate([bt, bx]), 2).reshape(1, two_n).astype(jnp.float32)

    # ---- pass 1: convs + bias + ReLU + concat + BN partial stats (Pallas) ----------------------
    y, stats = _fused_convs_with_stats(up_cl, x_pk, wt_pk, wxm, bias_big, store_dtype=cdt)

    # ---- fold per-tile / per-kw partials into per-channel batch statistics (tiny XLA ops) ------
    st = stats.reshape(-1, 8, two_n)
    sums = jnp.sum(st[:, 0, :], axis=0).reshape(2, n_out).sum(axis=0)
    sqs = jnp.sum(st[:, 1, :], axis=0).reshape(2, n_out).sum(axis=0)
    count = N * H2 * W2
    mean = sums / count
    var = jnp.maximum(sqs / count - mean * mean, 0.0)     # biased variance (training-mode BN)
    scale = gamma * jax.lax.rsqrt(var + eps)
    shift = beta - mean * scale

    # ---- epilogue: BN affine fused by XLA into the single y -> NCHW relayout pass --------------
    y6 = y.reshape(2, N, H, W, 2, n_out)                  # (kh, n, h, w, kw, c)   free reshape
    out = jnp.transpose(y6, (1, 5, 2, 0, 3, 4))           # (n, c, h, kh, w, kw)   one copy pass
    out = out.reshape(N, n_out, H2, W2).astype(jnp.float32)
    out = out * scale[None, :, None, None] + shift[None, :, None, None]
    return out.astype(out_dtype)


# ----------------------------------------------------------------------------
# Pure-jnp reference (independent code path) for correctness checking.
# ----------------------------------------------------------------------------
def reference(up_p, x_p, params, eps=1e-5):
    wt, bt, wx, bx, gamma, beta = params
    N, up_in, H, W = up_p.shape
    up_out = wt.shape[1]
    x_out = wx.shape[0]
    t = jnp.einsum('nihw,iokl->nohkwl', up_p, wt)          # transposed conv, k=2, s=2
    t = t.reshape(N, up_out, 2 * H, 2 * W) + bt[None, :, None, None]
    xo = jnp.einsum('nihw,oi->nohw', x_p, wx.reshape(x_out, -1)) + bx[None, :, None, None]
    cat = jnp.concatenate([t, xo], axis=1)
    r = jnp.maximum(cat, 0.0)
    mean = r.mean(axis=(0, 2, 3))
    var = r.var(axis=(0, 2, 3))
    rn = (r - mean[None, :, None, None]) * jax.lax.rsqrt(var + eps)[None, :, None, None]
    return rn * gamma[None, :, None, None] + beta[None, :, None, None]


if __name__ == "__main__":
    # Small deterministic setup; n_out chosen so 2*n_out = 128 (lane-dense stores).
    N, up_in, x_in, n_out = 2, 64, 64, 64
    H = W = 8
    up_out = x_out = n_out // 2

    key = jax.random.PRNGKey(0)
    k = jax.random.split(key, 8)
    wt = jax.random.normal(k[0], (up_in, up_out, 2, 2), jnp.float32) * 0.1   # ConvTranspose2d
    bt = jax.random.normal(k[1], (up_out,), jnp.float32) * 0.1
    wx = jax.random.normal(k[2], (x_out, x_in, 1, 1), jnp.float32) * 0.1     # Conv2d 1x1
    bx = jax.random.normal(k[3], (x_out,), jnp.float32) * 0.1
    gamma = 1.0 + 0.1 * jax.random.normal(k[6], (n_out,), jnp.float32)       # BN affine
    beta = 0.1 * jax.random.normal(k[7], (n_out,), jnp.float32)
    params = (wt, bt, wx, bx, gamma, beta)

    up_p = jax.random.normal(k[4], (N, up_in, H, W), jnp.float32)
    x_p = jax.random.normal(k[5], (N, x_in, 2 * H, 2 * W), jnp.float32)

    ref = jax.block_until_ready(reference(up_p, x_p, params))

    fwd_f32 = jax.jit(functools.partial(unet_up_block, compute_dtype=jnp.float32))
    fwd_bf16 = jax.jit(functools.partial(unet_up_block, compute_dtype=jnp.bfloat16))

    out_f32 = jax.block_until_ready(fwd_f32(up_p, x_p, params))
    out_bf16 = jax.block_until_ready(fwd_bf16(up_p, x_p, params))

    assert out_f32.shape == (N, n_out, 2 * H, 2 * W), out_f32.shape
    assert jnp.allclose(out_f32, ref, atol=1e-3, rtol=1e-3), \
        float(jnp.max(jnp.abs(out_f32 - ref)))
    # bf16 matmul inputs + bf16 intermediate storage -> looser tolerance
    assert jnp.allclose(out_bf16, ref, atol=1e-1, rtol=1e-1), \
        float(jnp.max(jnp.abs(out_bf16 - ref)))

    print("KERNEL_OK")
</pallas_src>

<mosaic_0001>
module attributes {stable_mosaic.version = 11 : i64} {
  func.func @_fused_conv_stats_kernel(%arg0: i32, %arg1: memref<64x64xf32, #tpu.memory_space<vmem>>, %arg2: memref<4x64x64xf32, #tpu.memory_space<vmem>>, %arg3: memref<4x64x32xf32, #tpu.memory_space<vmem>>, %arg4: memref<64x32xf32, #tpu.memory_space<vmem>>, %arg5: memref<1x128xf32, #tpu.memory_space<vmem>>, %arg6: memref<2x64x128xf32, #tpu.memory_space<vmem>>, %arg7: memref<8x128xf32, #tpu.memory_space<vmem>>) attributes {dimension_semantics = [#tpu.dimension_semantics<parallel>], iteration_bounds = array<i64: 2>, scalar_prefetch = 0 : i64, scratch_operands = 0 : i64, tpu.core_type = #tpu.core_type<tc>, window_params = [{transform_indices = @transform_0, window_bounds = array<i64: 64, 64>}, {transform_indices = @transform_1, window_bounds = array<i64: 4, 64, 64>}, {pipeline_mode = #tpu.pipeline_mode<synchronous>, transform_indices = @transform_2, window_bounds = array<i64: 4, 64, 32>}, {pipeline_mode = #tpu.pipeline_mode<synchronous>, transform_indices = @transform_3, window_bounds = array<i64: 64, 32>}, {pipeline_mode = #tpu.pipeline_mode<synchronous>, transform_indices = @transform_4, window_bounds = array<i64: 1, 128>}, {transform_indices = @transform_5, window_bounds = array<i64: 2, 64, 128>}, {transform_indices = @transform_6, window_bounds = array<i64: 8, 128>}]} {
    %c0 = arith.constant 0 : index
    %c0_0 = arith.constant 0 : index
    %0 = vector.load %arg1[%c0, %c0_0] : memref<64x64xf32, #tpu.memory_space<vmem>>, vector<64x64xf32>
    %c0_1 = arith.constant 0 : index
    %c0_2 = arith.constant 0 : index
    %1 = vector.load %arg4[%c0_1, %c0_2] : memref<64x32xf32, #tpu.memory_space<vmem>>, vector<64x32xf32>
    %c0_3 = arith.constant 0 : index
    %c0_4 = arith.constant 0 : index
    %2 = vector.load %arg5[%c0_3, %c0_4] : memref<1x128xf32, #tpu.memory_space<vmem>>, vector<1x128xf32>
    %cst = arith.constant 0.000000e+00 : f32
    %3 = vector.broadcast %cst : f32 to vector<1x128xf32>
    %cst_5 = arith.constant 0.000000e+00 : f32
    %4 = vector.broadcast %cst_5 : f32 to vector<1x128xf32>
    %c0_6 = arith.constant 0 : index
    %c0_7 = arith.constant 0 : index
    %c0_8 = arith.constant 0 : index
    %5 = vector.load %arg3[%c0_6, %c0_7, %c0_8] : memref<4x64x32xf32, #tpu.memory_space<vmem>>, vector<1x64x32xf32>
    %6 = vector.shape_cast %5 : vector<1x64x32xf32> to vector<64x32xf32>
    %cst_9 = arith.constant dense<0.000000e+00> : vector<64x32xf32>
    %7 = tpu.matmul %0, %6, %cst_9 {dimension_numbers = #tpu.dot_dimension_numbers<[1], [0], [0], [1], [0, 0, 1, 1], [], []>} : vector<64x64xf32>, vector<64x32xf32>, vector<64x32xf32> -> vector<64x32xf32>
    %c0_10 = arith.constant 0 : index
    %c0_11 = arith.constant 0 : index
    %c0_12 = arith.constant 0 : index
    %8 = vector.load %arg2[%c0_10, %c0_11, %c0_12] : memref<4x64x64xf32, #tpu.memory_space<vmem>>, vector<1x64x64xf32>
    %9 = vector.shape_cast %8 : vector<1x64x64xf32> to vector<64x64xf32>
    %cst_13 = arith.constant dense<0.000000e+00> : vector<64x32xf32>
    %10 = tpu.matmul %9, %1, %cst_13 {dimension_numbers = #tpu.dot_dimension_numbers<[1], [0], [0], [1], [0, 0, 1, 1], [], []>} : vector<64x64xf32>, vector<64x32xf32>, vector<64x32xf32> -> vector<64x32xf32>
    %c1 = arith.constant 1 : index
    %c0_14 = arith.constant 0 : index
    %c0_15 = arith.constant 0 : index
    %11 = vector.load %arg3[%c1, %c0_14, %c0_15] : memref<4x64x32xf32, #tpu.memory_space<vmem>>, vector<1x64x32xf32>
    %12 = vector.shape_cast %11 : vector<1x64x32xf32> to vector<64x32xf32>
    %cst_16 = arith.constant dense<0.000000e+00> : vector<64x32xf32>
    %13 = tpu.matmul %0, %12, %cst_16 {dimension_numbers = #tpu.dot_dimension_numbers<[1], [0], [0], [1], [0, 0, 1, 1], [], []>} : vector<64x64xf32>, vector<64x32xf32>, vector<64x32xf32> -> vector<64x32xf32>
    %c1_17 = arith.constant 1 : index
    %c0_18 = arith.constant 0 : index
    %c0_19 = arith.constant 0 : index
    %14 = vector.load %arg2[%c1_17, %c0_18, %c0_19] : memref<4x64x64xf32, #tpu.memory_space<vmem>>, vector<1x64x64xf32>
    %15 = vector.shape_cast %14 : vector<1x64x64xf32> to vector<64x64xf32>
    %cst_20 = arith.constant dense<0.000000e+00> : vector<64x32xf32>
    %16 = tpu.matmul %15, %1, %cst_20 {dimension_numbers = #tpu.dot_dimension_numbers<[1], [0], [0], [1], [0, 0, 1, 1], [], []>} : vector<64x64xf32>, vector<64x32xf32>, vector<64x32xf32> -> vector<64x32xf32>
    %17 = tpu.concatenate %7, %10, %13, %16 in 1 : vector<64x32xf32>, vector<64x32xf32>, vector<64x32xf32>, vector<64x32xf32> -> vector<64x128xf32>
    %18 = vector.broadcast %2 : vector<1x128xf32> to vector<64x128xf32>
    %19 = arith.addf %17, %18 : vector<64x128xf32>
    %cst_21 = arith.constant 0.000000e+00 : f32
    %20 = vector.broadcast %cst_21 : f32 to vector<64x128xf32>
    %21 = arith.maximumf %19, %20 : vector<64x128xf32>
    %c0_22 = arith.constant 0 : index
    %c0_23 = arith.constant 0 : index
    %c0_24 = arith.constant 0 : index
    %22 = vector.load %arg6[%c0_22, %c0_23, %c0_24] : memref<2x64x128xf32, #tpu.memory_space<vmem>>, vector<1x64x128xf32>
    %23 = vector.shape_cast %22 : vector<1x64x128xf32> to vector<64x128xf32>
    %24 = vector.shape_cast %21 : vector<64x128xf32> to vector<1x64x128xf32>
    tpu.vector_store %arg6[%c0_22, %c0_23, %c0_24], %24 {strides = array<i32>} : memref<2x64x128xf32, #tpu.memory_space<vmem>>, vector<1x64x128xf32>,
    %cst_25 = arith.constant dense<0.000000e+00> : vector<128xf32>
    %25 = vector.multi_reduction <add>, %21, %cst_25 [0] : vector<64x128xf32> to vector<128xf32>
    %26 = vector.shape_cast %25 : vector<128xf32> to vector<1x128xf32>
    %27 = arith.addf %3, %26 : vector<1x128xf32>
    %28 = arith.mulf %21, %21 : vector<64x128xf32>
    %cst_26 = arith.constant dense<0.000000e+00> : vector<128xf32>
    %29 = vector.multi_reduction <add>, %28, %cst_26 [0] : vector<64x128xf32> to vector<128xf32>
    %30 = vector.shape_cast %29 : vector<128xf32> to vector<1x128xf32>
    %31 = arith.addf %4, %30 : vector<1x128xf32>
    %c2 = arith.constant 2 : index
    %c0_27 = arith.constant 0 : index
    %c0_28 = arith.constant 0 : index
    %32 = vector.load %arg3[%c2, %c0_27, %c0_28] : memref<4x64x32xf32, #tpu.memory_space<vmem>>, vector<1x64x32xf32>
    %33 = vector.shape_cast %32 : vector<1x64x32xf32> to vector<64x32xf32>
    %cst_29 = arith.constant dense<0.000000e+00> : vector<64x32xf32>
    %34 = tpu.matmul %0, %33, %cst_29 {dimension_numbers = #tpu.dot_dimension_numbers<[1], [0], [0], [1], [0, 0, 1, 1], [], []>} : vector<64x64xf32>, vector<64x32xf32>, vector<64x32xf32> -> vector<64x32xf32>
    %c2_30 = arith.constant 2 : index
    %c0_31 = arith.constant 0 : index
    %c0_32 = arith.constant 0 : index
    %35 = vector.load %arg2[%c2_30, %c0_31, %c0_32] : memref<4x64x64xf32, #tpu.memory_space<vmem>>, vector<1x64x64xf32>
    %36 = vector.shape_cast %35 : vector<1x64x64xf32> to vector<64x64xf32>
    %cst_33 = arith.constant dense<0.000000e+00> : vector<64x32xf32>
    %37 = tpu.matmul %36, %1, %cst_33 {dimension_numbers = #tpu.dot_dimension_numbers<[1], [0], [0], [1], [0, 0, 1, 1], [], []>} : vector<64x64xf32>, vector<64x32xf32>, vector<64x32xf32> -> vector<64x32xf32>
    %c3 = arith.constant 3 : index
    %c0_34 = arith.constant 0 : index
    %c0_35 = arith.constant 0 : index
    %38 = vector.load %arg3[%c3, %c0_34, %c0_35] : memref<4x64x32xf32, #tpu.memory_space<vmem>>, vector<1x64x32xf32>
    %39 = vector.shape_cast %38 : vector<1x64x32xf32> to vector<64x32xf32>
    %cst_36 = arith.constant dense<0.000000e+00> : vector<64x32xf32>
    %40 = tpu.matmul %0, %39, %cst_36 {dimension_numbers = #tpu.dot_dimension_numbers<[1], [0], [0], [1], [0, 0, 1, 1], [], []>} : vector<64x64xf32>, vector<64x32xf32>, vector<64x32xf32> -> vector<64x32xf32>
    %c3_37 = arith.constant 3 : index
    %c0_38 = arith.constant 0 : index
    %c0_39 = arith.constant 0 : index
    %41 = vector.load %arg2[%c3_37, %c0_38, %c0_39] : memref<4x64x64xf32, #tpu.memory_space<vmem>>, vector<1x64x64xf32>
    %42 = vector.shape_cast %41 : vector<1x64x64xf32> to vector<64x64xf32>
    %cst_40 = arith.constant dense<0.000000e+00> : vector<64x32xf32>
    %43 = tpu.matmul %42, %1, %cst_40 {dimension_numbers = #tpu.dot_dimension_numbers<[1], [0], [0], [1], [0, 0, 1, 1], [], []>} : vector<64x64xf32>, vector<64x32xf32>, vector<64x32xf32> -> vector<64x32xf32>
    %44 = tpu.concatenate %34, %37, %40, %43 in 1 : vector<64x32xf32>, vector<64x32xf32>, vector<64x32xf32>, vector<64x32xf32> -> vector<64x128xf32>
    %45 = vector.broadcast %2 : vector<1x128xf32> to vector<64x128xf32>
    %46 = arith.addf %44, %45 : vector<64x128xf32>
    %cst_41 = arith.constant 0.000000e+00 : f32
    %47 = vector.broadcast %cst_41 : f32 to vector<64x128xf32>
    %48 = arith.maximumf %46, %47 : vector<64x128xf32>
    %c1_42 = arith.constant 1 : index
    %c0_43 = arith.constant 0 : index
    %c0_44 = arith.constant 0 : index
    %49 = vector.load %arg6[%c1_42, %c0_43, %c0_44] : memref<2x64x128xf32, #tpu.memory_space<vmem>>, vector<1x64x128xf32>
    %50 = vector.shape_cast %49 : vector<1x64x128xf32> to vector<64x128xf32>
    %51 = vector.shape_cast %48 : vector<64x128xf32> to vector<1x64x128xf32>
    tpu.vector_store %arg6[%c1_42, %c0_43, %c0_44], %51 {strides = array<i32>} : memref<2x64x128xf32, #tpu.memory_space<vmem>>, vector<1x64x128xf32>,
    %cst_45 = arith.constant dense<0.000000e+00> : vector<128xf32>
    %52 = vector.multi_reduction <add>, %48, %cst_45 [0] : vector<64x128xf32> to vector<128xf32>
    %53 = vector.shape_cast %52 : vector<128xf32> to vector<1x128xf32>
    %54 = arith.addf %27, %53 : vector<1x128xf32>
    %55 = arith.mulf %48, %48 : vector<64x128xf32>
    %cst_46 = arith.constant dense<0.000000e+00> : vector<128xf32>
    %56 = vector.multi_reduction <add>, %55, %cst_46 [0] : vector<64x128xf32> to vector<128xf32>
    %57 = vector.shape_cast %56 : vector<128xf32> to vector<1x128xf32>
    %58 = arith.addf %31, %57 : vector<1x128xf32>
    %cst_47 = arith.constant 0.000000e+00 : f32
    %59 = vector.broadcast %cst_47 : f32 to vector<6x128xf32>
    %60 = tpu.concatenate %54, %58, %59 in 0 : vector<1x128xf32>, vector<1x128xf32>, vector<6x128xf32> -> vector<8x128xf32>
    %c0_48 = arith.constant 0 : index
    %c0_49 = arith.constant 0 : index
    %61 = vector.load %arg7[%c0_48, %c0_49] : memref<8x128xf32, #tpu.memory_space<vmem>>, vector<8x128xf32>
    tpu.vector_store %arg7[%c0_48, %c0_49], %60 {strides = array<i32>} : memref<8x128xf32, #tpu.memory_space<vmem>>, vector<8x128xf32>,
    return
  }
  func.func @transform_0(%arg0: i32) -> (i32, i32) {
    %c0_i32 = arith.constant 0 : i32
    %c0_i32_0 = arith.constant 0 : i32
    return %arg0, %c0_i32 : i32, i32
  }
  func.func @transform_1(%arg0: i32) -> (i32, i32, i32) {
    %c0_i32 = arith.constant 0 : i32
    %c0_i32_0 = arith.constant 0 : i32
    %c0_i32_1 = arith.constant 0 : i32
    return %c0_i32, %arg0, %c0_i32_0 : i32, i32, i32
  }
  func.func @transform_2(%arg0: i32) -> (i32, i32, i32) {
    %c0_i32 = arith.constant 0 : i32
    %c0_i32_0 = arith.constant 0 : i32
    %c0_i32_1 = arith.constant 0 : i32
    %c0_i32_2 = arith.constant 0 : i32
    return %c0_i32, %c0_i32_0, %c0_i32_1 : i32, i32, i32
  }
  func.func @transform_3(%arg0: i32) -> (i32, i32) {
    %c0_i32 = arith.constant 0 : i32
    %c0_i32_0 = arith.constant 0 : i32
    %c0_i32_1 = arith.constant 0 : i32
    return %c0_i32, %c0_i32_0 : i32, i32
  }
  func.func @transform_4(%arg0: i32) -> (i32, i32) {
    %c0_i32 = arith.constant 0 : i32
    %c0_i32_0 = arith.constant 0 : i32
    %c0_i32_1 = arith.constant 0 : i32
    return %c0_i32, %c0_i32_0 : i32, i32
  }
  func.func @transform_5(%arg0: i32) -> (i32, i32, i32) {
    %c0_i32 = arith.constant 0 : i32
    %c0_i32_0 = arith.constant 0 : i32
    %c0_i32_1 = arith.constant 0 : i32
    return %c0_i32, %arg0, %c0_i32_0 : i32, i32, i32
  }
  func.func @transform_6(%arg0: i32) -> (i32, i32) {
    %c0_i32 = arith.constant 0 : i32
    %c0_i32_0 = arith.constant 0 : i32
    return %arg0, %c0_i32 : i32, i32
  }
}

</mosaic_0001>

<llo_original>
// kernel: tile.9
$region0: #{tile.9}
  %s0 = inlined_call_operand.vmem [shape: f32[2,64], index: 0, kind: input, shape index: {}]
  %s1 = inlined_call_operand.vmem [shape: f32[1,128], index: 1, kind: output, shape index: {}]
  $region1: #{tile.9} parent=0
    #allocation0 [shape = 'u8[4096]{0}', space=vmem, size = 0x1000, scoped, tag = 'scoped mem for output reshape']
    #allocation1 [shape = 'u8[4096]{0}', space=vmem, size = 0x1000, scoped, tag = 'scoped mem for input reshape']
    %s3 = ssub.s32 4, 1
    %v4 = vld [vmem:[%s0] sm:%s3]
    %5 = vst [vmem:[#allocation1] sm:%s3] %v4
    %v6 = vld [vmem:[#allocation1] sm:$0x1]
    %vm7 = vcmask 523264
    %8 = vst.msk [vmem:[#allocation0] sm:$0x1] %vm7, %v6
    %s9 = scalar_lea.vmem [#allocation1], 1
    %v10 = vld [vmem:[%s9] sm:$0x1]
    %11 = vrot.lane.b32.xlu0 %v10, 64
    %v12 = vpop.permute.xlu0 %11
    %vm13 = vcmask 1048064
    %14 = vst.msk [vmem:[#allocation0] sm:$0x1] %vm13, %v12
    %s16 = ssub.s32 2, 1
    %v17 = vld [vmem:[#allocation0] sm:%s16]
    %s19 = ssub.s32 2, 1
    %20 = vst [vmem:[%s1] sm:%s19] %v17

// kernel: tile.8
$region0: #{tile.8}
  #allocation0 [shape = 's32[1]{0}', space=sflag, size = 0x4, scoped, tag = 'scoped memory for tile.8']
  %s0 = inlined_call_operand.vmem [shape: f32[64], index: 0, kind: input, shape index: {}]
  %s1 = inlined_call_operand.vmem [shape: f32[2,64], index: 1, kind: output, shape index: {}]
  // Predicated region
  $region2: #{tile.8} parent=0 // pred_check
    _
  $region3: #{tile.8} parent=0 // pred_check_branch
    %3 = sbr.rel (0) target = $region5
  $region4: #{tile.8} parent=0 // pred_region
    _
  $region5: #{tile.8} parent=0 // pred_fallthru
    _
  %v4 = vld [vmem:[%s0] ss:$0 sm:$0xff]
  %5 = vst [vmem:[%s1] sm:$0x3] %v4

// kernel: unet_up_block.1
$region0: #{unet_up_block.1}
  #allocation0 [shape = 'u32[]', space=smem, size = 0x4, offset = 0x4, fixed_abs, tag = 'smem constant byte address 0x4 - core index']
  #allocation1 [shape = 'u32[72,128]{1,0:T(1,128)}', space=vmem, size = 0x9000, scoped, tag = 'internal scratch']
  %s0 = inlined_call_operand.vmem [shape: f32[128,64], index: 0, kind: input, shape index: {}]
  %s1 = inlined_call_operand.vmem [shape: f32[4,128,64], index: 1, kind: input, shape index: {}]
  %s2 = inlined_call_operand.vmem [shape: f32[4,64,32], index: 2, kind: input, shape index: {}]
  %s3 = inlined_call_operand.vmem [shape: f32[64,32], index: 3, kind: input, shape index: {}]
  %s4 = inlined_call_operand.vmem [shape: f32[1,128], index: 4, kind: input, shape index: {}]
  %s5 = inlined_call_operand.vmem [shape: f32[2,128,128], index: 5, kind: output, shape index: {0}]
  %s6 = inlined_call_operand.vmem [shape: f32[16,128], index: 6, kind: output, shape index: {1}]
  %7 = xla_tuple %s5, %s6
  %s8 = sld [smem:[#allocation0]]
  $region133: #{unet_up_block.1} parent=0
    _
  %s10 = ssub.s32 1, %s8
  %s11 = scalar_select 0, %s10, %s8
  $region1: #{unet_up_block.1} parent=0
    #allocation2 [shape = 'u8[262144]{0}', space=vmem, size = 0x40000, scoped, tag = 'input window, operand 1']
    #allocation3 [shape = 'u8[131072]{0}', space=vmem, size = 0x20000, scoped, tag = 'output window, operand 0']
    loop: start=0, step=1, limit=4
    $region2: #{unet_up_block.1} parent=1 // loop_pre_header
      _
    $region3: #{unet_up_block.1} parent=1 // loop_header
      %s13 = sphi 0, %s17
      %p14 = scmp.ge.s32.totalorder %s13, 4
      %s23 = sphi 0, %s25
      %s26 = sphi 0, %s23
      %s27 = sphi 0, %s26
      %s43 = sphi 0, %s27
      %s49 = sphi 0, %s51
      %s52 = sphi 0, %s49
      %s53 = sphi 0, %s52
      %s69 = sphi 0, %s53
      %s73 = sphi 0, %s73
      %s75 = sphi 0, %s73
      %s76 = sphi 0, %s75
      %s90 = sphi 0, %s76
      %s94 = sphi 0, %s94
      %s96 = sphi 0, %s94
      %s97 = sphi 0, %s96
      %s111 = sphi 0, %s97
      %s115 = sphi 0, %s115
      %s117 = sphi 0, %s115
      %s118 = sphi 0, %s117
      %s132 = sphi 0, %s118
      %s138 = sphi 0, %s140
      %s141 = sphi 0, %s138
      %s142 = sphi 0, %s141
      %s158 = sphi 0, %s142
      %s164 = sphi 0, %s166
      %s167 = sphi 0, %s164
      %s168 = sphi 0, %s167
      %s184 = sphi 0, %s168
    $region4: #{unet_up_block.1} parent=1 // loop_header_branch
      %16 = sbr.rel (%p14) target = $region8
    $region5: #{unet_up_block.1} parent=1 // loop_body
      %s18 = ssub.s32 %s13, 1
      %s19 = ssub.s32 %s13, 2
      %s20 = sadd.s32 %s13, 1
      %s21 = ssub.s32 %s13, %s20
      %p22 = scmp.eq.s32.totalorder %s21, 0
      %s24 = sadd.s32 %s23, 1
      %s25 = scalar_select %p22, %s23, %s24
      %p28 = pneg %p22
      %p29 = scmp.eq.s32.totalorder %s13, 1
      %p30 = por %p28, %p29
      %p31 = scmp.ne.s32.totalorder %s23, %s26
      %p32 = scmp.eq.s32.totalorder %s13, 0
      %p33 = por %p31, %p32
      %p34 = scmp.ne.s32.totalorder %s23, %s26
      %p35 = scmp.eq.s32.totalorder %s18, 1
      %p36 = por %p34, %p35
      %p37 = scmp.ne.s32.totalorder %s26, %s27
      %p38 = scmp.eq.s32.totalorder %s18, 0
      %p39 = por %p37, %p38
      %p40 = scmp.ne.s32.totalorder %s26, %s27
      %p41 = scmp.eq.s32.totalorder %s19, 1
      %p42 = por %p40, %p41
      %p44 = scmp.ne.s32.totalorder %s27, %s43
      %p45 = scmp.eq.s32.totalorder %s19, 0
      %p46 = por %p44, %p45
      %s47 = ssub.s32 %s13, %s20
      %p48 = scmp.eq.s32.totalorder %s47, 0
      %s50 = sadd.s32 %s49, 1
      %s51 = scalar_select %p48, %s49, %s50
      %p54 = pneg %p48
      %p55 = scmp.eq.s32.totalorder %s13, 1
      %p56 = por %p54, %p55
      %p57 = scmp.ne.s32.totalorder %s49, %s52
      %p58 = scmp.eq.s32.totalorder %s13, 0
      %p59 = por %p57, %p58
      %p60 = scmp.ne.s32.totalorder %s49, %s52
      %p61 = scmp.eq.s32.totalorder %s18, 1
      %p62 = por %p60, %p61
      %p63 = scmp.ne.s32.totalorder %s52, %s53
      %p64 = scmp.eq.s32.totalorder %s18, 0
      %p65 = por %p63, %p64
      %p66 = scmp.ne.s32.totalorder %s52, %s53
      %p67 = scmp.eq.s32.totalorder %s19, 1
      %p68 = por %p66, %p67
      %p70 = scmp.ne.s32.totalorder %s53, %s69
      %p71 = scmp.eq.s32.totalorder %s19, 0
      %p72 = por %p70, %p71
      %s74 = sadd.s32 %s73, 1
      %p77 = scmp.eq.s32.totalorder %s13, 1
      %p78 = scmp.ne.s32.totalorder %s73, %s75
      %p79 = scmp.eq.s32.totalorder %s13, 0
      %p80 = por %p78, %p79
      %p81 = scmp.ne.s32.totalorder %s73, %s75
      %p82 = scmp.eq.s32.totalorder %s18, 1
      %p83 = por %p81, %p82
      %p84 = scmp.ne.s32.totalorder %s75, %s76
      %p85 = scmp.eq.s32.totalorder %s18, 0
      %p86 = por %p84, %p85
      %p87 = scmp.ne.s32.totalorder %s75, %s76
      %p88 = scmp.eq.s32.totalorder %s19, 1
      %p89 = por %p87, %p88
      %p91 = scmp.ne.s32.totalorder %s76, %s90
      %p92 = scmp.eq.s32.totalorder %s19, 0
      %p93 = por %p91, %p92
      %s95 = sadd.s32 %s94, 1
      %p98 = scmp.eq.s32.totalorder %s13, 1
      %p99 = scmp.ne.s32.totalorder %s94, %s96
      %p100 = scmp.eq.s32.totalorder %s13, 0
      %p101 = por %p99, %p100
      %p102 = scmp.ne.s32.totalorder %s94, %s96
      %p103 = scmp.eq.s32.totalorder %s18, 1
      %p104 = por %p102, %p103
      %p105 = scmp.ne.s32.totalorder %s96, %s97
      %p106 = scmp.eq.s32.totalorder %s18, 0
      %p107 = por %p105, %p106
      %p108 = scmp.ne.s32.totalorder %s96, %s97
      %p109 = scmp.eq.s32.totalorder %s19, 1
      %p110 = por %p108, %p109
      %p112 = scmp.ne.s32.totalorder %s97, %s111
      %p113 = scmp.eq.s32.totalorder %s19, 0
      %p114 = por %p112, %p113
      %s116 = sadd.s32 %s115, 1
      %p119 = scmp.eq.s32.totalorder %s13, 1
      %p120 = scmp.ne.s32.totalorder %s115, %s117
      %p121 = scmp.eq.s32.totalorder %s13, 0
      %p122 = por %p120, %p121
      %p123 = scmp.ne.s32.totalorder %s115, %s117
      %p124 = scmp.eq.s32.totalorder %s18, 1
      %p125 = por %p123, %p124
      %p126 = scmp.ne.s32.totalorder %s117, %s118
      %p127 = scmp.eq.s32.totalorder %s18, 0
      %p128 = por %p126, %p127
      %p129 = scmp.ne.s32.totalorder %s117, %s118
      %p130 = scmp.eq.s32.totalorder %s19, 1
      %p131 = por %p129, %p130
      %p133 = scmp.ne.s32.totalorder %s118, %s132
      %p134 = scmp.eq.s32.totalorder %s19, 0
      %p135 = por %p133, %p134
      %s136 = ssub.s32 %s13, %s20
      %p137 = scmp.eq.s32.totalorder %s136, 0
      %s139 = sadd.s32 %s138, 1
      %s140 = scalar_select %p137, %s138, %s139
      %p143 = pneg %p137
      %p144 = scmp.eq.s32.totalorder %s13, 1
      %p145 = por %p143, %p144
      %p146 = scmp.ne.s32.totalorder %s138, %s141
      %p147 = scmp.eq.s32.totalorder %s13, 0
      %p148 = por %p146, %p147
      %p149 = scmp.ne.s32.totalorder %s138, %s141
      %p150 = scmp.eq.s32.totalorder %s18, 1
      %p151 = por %p149, %p150
      %p152 = scmp.ne.s32.totalorder %s141, %s142
      %p153 = scmp.eq.s32.totalorder %s18, 0
      %p154 = por %p152, %p153
      %p155 = scmp.ne.s32.totalorder %s141, %s142
      %p156 = scmp.eq.s32.totalorder %s19, 1
      %p157 = por %p155, %p156
      %p159 = scmp.ne.s32.totalorder %s142, %s158
      %p160 = scmp.eq.s32.totalorder %s19, 0
      %p161 = por %p159, %p160
      %s162 = ssub.s32 %s13, %s20
      %p163 = scmp.eq.s32.totalorder %s162, 0
      %s165 = sadd.s32 %s164, 1
      %s166 = scalar_select %p163, %s164, %s165
      %p169 = pneg %p163
      %p170 = scmp.eq.s32.totalorder %s13, 1
      %p171 = por %p169, %p170
      %p172 = scmp.ne.s32.totalorder %s164, %s167
      %p173 = scmp.eq.s32.totalorder %s13, 0
      %p174 = por %p172, %p173
      %p175 = scmp.ne.s32.totalorder %s164, %s167
      %p176 = scmp.eq.s32.totalorder %s18, 1
      %p177 = por %p175, %p176
      %p178 = scmp.ne.s32.totalorder %s167, %s168
      %p179 = scmp.eq.s32.totalorder %s18, 0
      %p180 = por %p178, %p179
      %p181 = scmp.ne.s32.totalorder %s167, %s168
      %p182 = scmp.eq.s32.totalorder %s19, 1
      %p183 = por %p181, %p182
      %p185 = scmp.ne.s32.totalorder %s168, %s184
      %p186 = scmp.eq.s32.totalorder %s19, 0
      %p187 = por %p185, %p186
      %p188 = scmp.le.s32.totalorder 1, %s13
      %p189 = scmp.lt.s32.totalorder %s13, 3
      %p190 = pnand %p188, %p189
      %p191 = pneg %p190
      // Predicated region
      $region9: #{unet_up_block.1} parent=5 // pred_check
        _
      $region10: #{unet_up_block.1} parent=5 // pred_check_branch
        %193 = sbr.rel (%p190) target = $region12
      $region11: #{unet_up_block.1} parent=5 // pred_region
        %s194 = ssub.s32 %s13, 1
        // Predicated region
        $region13: #{unet_up_block.1} parent=11 // pred_check
          %p195 = pneg %p86
        $region14: #{unet_up_block.1} parent=11 // pred_check_branch
          %197 = sbr.rel (%p195) target = $region16
        $region15: #{unet_up_block.1} parent=11 // pred_region
          _
        $region16: #{unet_up_block.1} parent=11 // pred_fallthru
          _
        // Predicated region
        $region17: #{unet_up_block.1} parent=11 // pred_check
          %p198 = pneg %p107
        $region18: #{unet_up_block.1} parent=11 // pred_check_branch
          %200 = sbr.rel (%p198) target = $region20
        $region19: #{unet_up_block.1} parent=11 // pred_region
          _
        $region20: #{unet_up_block.1} parent=11 // pred_fallthru
          _
        // Predicated region
        $region21: #{unet_up_block.1} parent=11 // pred_check
          %p201 = pneg %p128
        $region22: #{unet_up_block.1} parent=11 // pred_check_branch
          %203 = sbr.rel (%p201) target = $region24
        $region23: #{unet_up_block.1} parent=11 // pred_region
          _
        $region24: #{unet_up_block.1} parent=11 // pred_fallthru
          _
      $region12: #{unet_up_block.1} parent=5 // pred_fallthru
        _
      %p204 = scmp.lt.s32.totalorder %s13, 2
      // Predicated region
      $region25: #{unet_up_block.1} parent=5 // pred_check
        %p205 = pneg %p204
      $region26: #{unet_up_block.1} parent=5 // pred_check_branch
        %207 = sbr.rel (%p205) target = $region28
      $region27: #{unet_up_block.1} parent=5 // pred_region
        // Predicated region
        $region29: #{unet_up_block.1} parent=27 // pred_check
          %p208 = pneg %p33
        $region30: #{unet_up_block.1} parent=27 // pred_check_branch
          %210 = sbr.rel (%p208) target = $region32
        $region31: #{unet_up_block.1} parent=27 // pred_region
          %s211 = smul.u32 8, %s13
          %p212 = scmp.lt.s32.totalorder %s211, 15
          %s213 = scalar_select %p212, %s211, 15
          %s214 = smul.addr %s213, 8
          %s215 = scalar_lea.vmem %s0, %s214
          %s216 = smul.u32 8, %s13
        $region32: #{unet_up_block.1} parent=27 // pred_fallthru
          _
        // Predicated region
        $region33: #{unet_up_block.1} parent=27 // pred_check
          %p217 = pneg %p59
        $region34: #{unet_up_block.1} parent=27 // pred_check_branch
          %219 = sbr.rel (%p217) target = $region36
        $region35: #{unet_up_block.1} parent=27 // pred_region
          %s220 = sand.u32 %s49, 1
          %s221 = sand.u32 %s49, 1
          %s222 = smul.addr %s221, 256
          %s223 = scalar_lea.vmem [#allocation2], %s222
          %s224 = smul.u32 8, %s13
          %s225 = smul.addr %s224, 8
          %s226 = scalar_lea.vmem %s1, %s225
          // Predicated region
          $region37: #{unet_up_block.1} parent=35 // pred_check
            _
          $region38: #{unet_up_block.1} parent=35 // pred_check_branch
            %228 = sbr.rel (0) target = $region40
          $region39: #{unet_up_block.1} parent=35 // pred_region
            // Predicated region
            $region41: #{unet_up_block.1} parent=39 // pred_check
              _
            $region42: #{unet_up_block.1} parent=39 // pred_check_branch
              %230 = sbr.rel (0) target = $region44
            $region43: #{unet_up_block.1} parent=39 // pred_region
              // Predicated region
              $region56: #{unet_up_block.1} parent=43 // pred_check
                _
              $region57: #{unet_up_block.1} parent=43 // pred_check_branch
                %308 = sbr.rel (0) target = $region59
              $region58: #{unet_up_block.1} parent=43 // pred_region
                loop: start=0, step=1, limit=1
                $region60: #{unet_up_block.1} parent=58 // loop_pre_header
                  _
                $region61: #{unet_up_block.1} parent=58 // loop_header
                  %s310 = sphi 0, %s314
                  %p311 = scmp.ge.s32.totalorder %s310, 1
                  %s315 = sphi %s226, %s226
                  %s316 = sphi %s223, %s223
                $region62: #{unet_up_block.1} parent=58 // loop_header_branch
                  %313 = sbr.rel (%p311) target = $region66
                $region63: #{unet_up_block.1} parent=58 // loop_body
                  %v317 = vld [vmem:[%s315] sm:$0xff]
                  %318 = vst [vmem:[%s316] sm:$0xff] %v317
                  %v319 = vld [vmem:[%s315 + $0x8] sm:$0xff]
                  %320 = vst [vmem:[%s316 + $0x8] sm:$0xff] %v319
                  %v321 = vld [vmem:[%s315 + $0x10] sm:$0xff]
                  %322 = vst [vmem:[%s316 + $0x10] sm:$0xff] %v321
                  %v323 = vld [vmem:[%s315 + $0x18] sm:$0xff]
                  %324 = vst [vmem:[%s316 + $0x18] sm:$0xff] %v323
                  %v325 = vld [vmem:[%s315 + $0x20] sm:$0xff]
                  %326 = vst [vmem:[%s316 + $0x20] sm:$0xff] %v325
                  %v327 = vld [vmem:[%s315 + $0x28] sm:$0xff]
                  %328 = vst [vmem:[%s316 + $0x28] sm:$0xff] %v327
                  %v329 = vld [vmem:[%s315 + $0x30] sm:$0xff]
                  %330 = vst [vmem:[%s316 + $0x30] sm:$0xff] %v329
                  %v331 = vld [vmem:[%s315 + $0x38] sm:$0xff]
                  %332 = vst [vmem:[%s316 + $0x38] sm:$0xff] %v331
                  %v333 = vld [vmem:[%s315 + $0x80] sm:$0xff]
                  %334 = vst [vmem:[%s316 + $0x40] sm:$0xff] %v333
                  %v335 = vld [vmem:[%s315 + $0x88] sm:$0xff]
                  %336 = vst [vmem:[%s316 + $0x48] sm:$0xff] %v335
                  %v337 = vld [vmem:[%s315 + $0x90] sm:$0xff]
                  %338 = vst [vmem:[%s316 + $0x50] sm:$0xff] %v337
                  %v339 = vld [vmem:[%s315 + $0x98] sm:$0xff]
                  %340 = vst [vmem:[%s316 + $0x58] sm:$0xff] %v339
                  %v341 = vld [vmem:[%s315 + $0xa0] sm:$0xff]
                  %342 = vst [vmem:[%s316 + $0x60] sm:$0xff] %v341
                  %v343 = vld [vmem:[%s315 + $0xa8] sm:$0xff]
                  %344 = vst [vmem:[%s316 + $0x68] sm:$0xff] %v343
                  %v345 = vld [vmem:[%s315 + $0xb0] sm:$0xff]
                  %346 = vst [vmem:[%s316 + $0x70] sm:$0xff] %v345
                  %v347 = vld [vmem:[%s315 + $0xb8] sm:$0xff]
                  %348 = vst [vmem:[%s316 + $0x78] sm:$0xff] %v347
                  %v349 = vld [vmem:[%s315 + $0x100] sm:$0xff]
                  %350 = vst [vmem:[%s316 + $0x80] sm:$0xff] %v349
                  %v351 = vld [vmem:[%s315 + $0x108] sm:$0xff]
                  %352 = vst [vmem:[%s316 + $0x88] sm:$0xff] %v351
                  %v353 = vld [vmem:[%s315 + $0x110] sm:$0xff]
                  %354 = vst [vmem:[%s316 + $0x90] sm:$0xff] %v353
                  %v355 = vld [vmem:[%s315 + $0x118] sm:$0xff]
                  %356 = vst [vmem:[%s316 + $0x98] sm:$0xff] %v355
                  %v357 = vld [vmem:[%s315 + $0x120] sm:$0xff]
                  %358 = vst [vmem:[%s316 + $0xa0] sm:$0xff] %v357
                  %v359 = vld [vmem:[%s315 + $0x128] sm:$0xff]
                  %360 = vst [vmem:[%s316 + $0xa8] sm:$0xff] %v359
                  %v361 = vld [vmem:[%s315 + $0x130] sm:$0xff]
                  %362 = vst [vmem:[%s316 + $0xb0] sm:$0xff] %v361
                  %v363 = vld [vmem:[%s315 + $0x138] sm:$0xff]
                  %364 = vst [vmem:[%s316 + $0xb8] sm:$0xff] %v363
                  %v365 = vld [vmem:[%s315 + $0x180] sm:$0xff]
                  %366 = vst [vmem:[%s316 + $0xc0] sm:$0xff] %v365
                  %v367 = vld [vmem:[%s315 + $0x188] sm:$0xff]
                  %368 = vst [vmem:[%s316 + $0xc8] sm:$0xff] %v367
                  %v369 = vld [vmem:[%s315 + $0x190] sm:$0xff]
                  %370 = vst [vmem:[%s316 + $0xd0] sm:$0xff] %v369
                  %v371 = vld [vmem:[%s315 + $0x198] sm:$0xff]
                  %372 = vst [vmem:[%s316 + $0xd8] sm:$0xff] %v371
                  %v373 = vld [vmem:[%s315 + $0x1a0] sm:$0xff]
                  %374 = vst [vmem:[%s316 + $0xe0] sm:$0xff] %v373
                  %v375 = vld [vmem:[%s315 + $0x1a8] sm:$0xff]
                  %376 = vst [vmem:[%s316 + $0xe8] sm:$0xff] %v375
                  %v377 = vld [vmem:[%s315 + $0x1b0] sm:$0xff]
                  %378 = vst [vmem:[%s316 + $0xf0] sm:$0xff] %v377
                  %v379 = vld [vmem:[%s315 + $0x1b8] sm:$0xff]
                  %380 = vst [vmem:[%s316 + $0xf8] sm:$0xff] %v379
                $region64: #{unet_up_block.1} parent=58 // loop_footer
                  %s314 = sadd.s32 1, %s310
                $region65: #{unet_up_block.1} parent=58 // loop_footer_branch
                  %309 = sbr.rel target = $region61
                $region66: #{unet_up_block.1} parent=58 // loop_exit
                  _
              $region59: #{unet_up_block.1} parent=43 // pred_fallthru
                _
              // Predicated region
              $region67: #{unet_up_block.1} parent=43 // pred_check
                _
              $region68: #{unet_up_block.1} parent=43 // pred_check_branch
                %382 = sbr.rel target = $region70
              $region69: #{unet_up_block.1} parent=43 // pred_region
                _
              $region70: #{unet_up_block.1} parent=43 // pred_fallthru
                _
            $region44: #{unet_up_block.1} parent=39 // pred_fallthru
              _
            // Predicated region
            $region45: #{unet_up_block.1} parent=39 // pred_check
              _
            $region46: #{unet_up_block.1} parent=39 // pred_check_branch
              %232 = sbr.rel target = $region48
            $region47: #{unet_up_block.1} parent=39 // pred_region
              %s234 = ssub.s32 256, 1
              loop: start=0, step=1, limit=1
              $region49: #{unet_up_block.1} parent=47 // loop_pre_header
                _
              $region50: #{unet_up_block.1} parent=47 // loop_header
                %s236 = sphi 0, %s240
                %p237 = scmp.ge.s32.totalorder %s236, 1
                %s241 = sphi %s226, %s226
                %s242 = sphi %s223, %s223
              $region51: #{unet_up_block.1} parent=47 // loop_header_branch
                %239 = sbr.rel (%p237) target = $region55
              $region52: #{unet_up_block.1} parent=47 // loop_body
                %v243 = vld [vmem:[%s241] sm:%s234]
                %244 = vst [vmem:[%s242] sm:%s234] %v243
                %v245 = vld [vmem:[%s241 + $0x8] sm:%s234]
                %246 = vst [vmem:[%s242 + $0x8] sm:%s234] %v245
                %v247 = vld [vmem:[%s241 + $0x10] sm:%s234]
                %248 = vst [vmem:[%s242 + $0x10] sm:%s234] %v247
                %v249 = vld [vmem:[%s241 + $0x18] sm:%s234]
                %250 = vst [vmem:[%s242 + $0x18] sm:%s234] %v249
                %v251 = vld [vmem:[%s241 + $0x20] sm:%s234]
                %252 = vst [vmem:[%s242 + $0x20] sm:%s234] %v251
                %v253 = vld [vmem:[%s241 + $0x28] sm:%s234]
                %254 = vst [vmem:[%s242 + $0x28] sm:%s234] %v253
                %v255 = vld [vmem:[%s241 + $0x30] sm:%s234]
                %256 = vst [vmem:[%s242 + $0x30] sm:%s234] %v255
                %v257 = vld [vmem:[%s241 + $0x38] sm:%s234]
                %258 = vst [vmem:[%s242 + $0x38] sm:%s234] %v257
                %v259 = vld [vmem:[%s241 + $0x80] sm:%s234]
                %260 = vst [vmem:[%s242 + $0x40] sm:%s234] %v259
                %v261 = vld [vmem:[%s241 + $0x88] sm:%s234]
                %262 = vst [vmem:[%s242 + $0x48] sm:%s234] %v261
                %v263 = vld [vmem:[%s241 + $0x90] sm:%s234]
                %264 = vst [vmem:[%s242 + $0x50] sm:%s234] %v263
                %v265 = vld [vmem:[%s241 + $0x98] sm:%s234]
                %266 = vst [vmem:[%s242 + $0x58] sm:%s234] %v265
                %v267 = vld [vmem:[%s241 + $0xa0] sm:%s234]
                %268 = vst [vmem:[%s242 + $0x60] sm:%s234] %v267
                %v269 = vld [vmem:[%s241 + $0xa8] sm:%s234]
                %270 = vst [vmem:[%s242 + $0x68] sm:%s234] %v269
                %v271 = vld [vmem:[%s241 + $0xb0] sm:%s234]
                %272 = vst [vmem:[%s242 + $0x70] sm:%s234] %v271
                %v273 = vld [vmem:[%s241 + $0xb8] sm:%s234]
                %274 = vst [vmem:[%s242 + $0x78] sm:%s234] %v273
                %v275 = vld [vmem:[%s241 + $0x100] sm:%s234]
                %276 = vst [vmem:[%s242 + $0x80] sm:%s234] %v275
                %v277 = vld [vmem:[%s241 + $0x108] sm:%s234]
                %278 = vst [vmem:[%s242 + $0x88] sm:%s234] %v277
                %v279 = vld [vmem:[%s241 + $0x110] sm:%s234]
                %280 = vst [vmem:[%s242 + $0x90] sm:%s234] %v279
                %v281 = vld [vmem:[%s241 + $0x118] sm:%s234]
                %282 = vst [vmem:[%s242 + $0x98] sm:%s234] %v281
                %v283 = vld [vmem:[%s241 + $0x120] sm:%s234]
                %284 = vst [vmem:[%s242 + $0xa0] sm:%s234] %v283
                %v285 = vld [vmem:[%s241 + $0x128] sm:%s234]
                %286 = vst [vmem:[%s242 + $0xa8] sm:%s234] %v285
                %v287 = vld [vmem:[%s241 + $0x130] sm:%s234]
                %288 = vst [vmem:[%s242 + $0xb0] sm:%s234] %v287
                %v289 = vld [vmem:[%s241 + $0x138] sm:%s234]
                %290 = vst [vmem:[%s242 + $0xb8] sm:%s234] %v289
                %v291 = vld [vmem:[%s241 + $0x180] sm:%s234]
                %292 = vst [vmem:[%s242 + $0xc0] sm:%s234] %v291
                %v293 = vld [vmem:[%s241 + $0x188] sm:%s234]
                %294 = vst [vmem:[%s242 + $0xc8] sm:%s234] %v293
                %v295 = vld [vmem:[%s241 + $0x190] sm:%s234]
                %296 = vst [vmem:[%s242 + $0xd0] sm:%s234] %v295
                %v297 = vld [vmem:[%s241 + $0x198] sm:%s234]
                %298 = vst [vmem:[%s242 + $0xd8] sm:%s234] %v297
                %v299 = vld [vmem:[%s241 + $0x1a0] sm:%s234]
                %300 = vst [vmem:[%s242 + $0xe0] sm:%s234] %v299
                %v301 = vld [vmem:[%s241 + $0x1a8] sm:%s234]
                %302 = vst [vmem:[%s242 + $0xe8] sm:%s234] %v301
                %v303 = vld [vmem:[%s241 + $0x1b0] sm:%s234]
                %304 = vst [vmem:[%s242 + $0xf0] sm:%s234] %v303
                %v305 = vld [vmem:[%s241 + $0x1b8] sm:%s234]
                %306 = vst [vmem:[%s242 + $0xf8] sm:%s234] %v305
              $region53: #{unet_up_block.1} parent=47 // loop_footer
                %s240 = sadd.s32 1, %s236
              $region54: #{unet_up_block.1} parent=47 // loop_footer_branch
                %235 = sbr.rel target = $region50
              $region55: #{unet_up_block.1} parent=47 // loop_exit
                _
            $region48: #{unet_up_block.1} parent=39 // pred_fallthru
              _
          $region40: #{unet_up_block.1} parent=35 // pred_fallthru
            _
          %383 = vnop
        $region36: #{unet_up_block.1} parent=27 // pred_fallthru
          _
      $region28: #{unet_up_block.1} parent=5 // pred_fallthru
        _
      %p384 = scmp.le.s32.totalorder 1, %s13
      %p385 = scmp.lt.s32.totalorder %s13, 3
      %p386 = pnand %p384, %p385
      %p387 = pneg %p386
      // Predicated region
      $region71: #{unet_up_block.1} parent=5 // pred_check
        _
      $region72: #{unet_up_block.1} parent=5 // pred_check_branch
        %389 = sbr.rel (%p386) target = $region74
      $region73: #{unet_up_block.1} parent=5 // pred_region
        %s390 = ssub.s32 %s13, 1
        %s391 = sand.u32 %s52, 1
        %s392 = sand.u32 %s52, 1
        %s393 = smul.addr %s392, 256
        %s394 = scalar_lea.vmem [#allocation2], %s393
        // Predicated region
        $region75: #{unet_up_block.1} parent=73 // pred_check
          %p395 = pneg %p65
        $region76: #{unet_up_block.1} parent=73 // pred_check_branch
          %397 = sbr.rel (%p395) target = $region78
        $region77: #{unet_up_block.1} parent=73 // pred_region
          _
        $region78: #{unet_up_block.1} parent=73 // pred_fallthru
          _
        %s398 = smul.u32 8, %s18
        %p399 = scmp.lt.s32.totalorder %s398, 15
        %s400 = scalar_select %p399, %s398, 15
        %s401 = smul.addr %s400, 8
        %s402 = scalar_lea.vmem %s0, %s401
        %p403 = pneg %p39
        %p404 = pneg %p36
        %s405 = sand.u32 %s52, 1
        %s406 = sand.u32 %s52, 1
        %s407 = smul.addr %s406, 256
        %s408 = scalar_lea.vmem [#allocation2], %s407
        %p409 = pneg %p65
        %p410 = pneg %p62
        %p411 = pneg %p86
        %p412 = pneg %p83
        %p413 = pneg %p107
        %p414 = pneg %p104
        %p415 = pneg %p128
        %p416 = pneg %p125
        %p417 = pneg %p154
        %p418 = pneg %p151
        %s419 = sand.u32 %s141, 1
        %s420 = sand.u32 %s141, 1
        %s421 = smul.addr %s420, 128
        %s422 = scalar_lea.vmem [#allocation3], %s421
        %p423 = pneg %p180
        %p424 = pneg %p177
        %p425 = scmp.lt.s32.totalorder %s18, 1
        %s426 = scalar_select %p425, %s18, 1
        %s427 = smul.addr %s426, 8
        %s428 = scalar_lea.vmem %s6, %s427
        %s429 = smul.u32 8, %s18
        %p430 = scmp.lt.s32.totalorder %s429, 15
        %s431 = scalar_select %p430, %s429, 15
        %s432 = smul.addr %s431, 8
        %s433 = scalar_lea.vmem %s0, %s432
        %s434 = smul.u32 8, %s18
        %s435 = smul.u32 8, %s18
        %s436 = smul.u32 8, %s18
        %p437 = scmp.lt.s32.totalorder %s18, 1
        %s438 = scalar_select %p437, %s18, 1
        %s439 = smul.addr %s438, 8
        %s440 = scalar_lea.vmem %s6, %s439
        %v441 = vld [vmem:[%s433] sm:$0xff]
        %v442 = vld [vmem:[%s433 + $0x8] sm:$0xff]
        %v443 = vld [vmem:[%s433 + $0x10] sm:$0xff]
        %v444 = vld [vmem:[%s433 + $0x18] sm:$0xff]
        %v445 = vld [vmem:[%s433 + $0x20] sm:$0xff]
        %v446 = vld [vmem:[%s433 + $0x28] sm:$0xff]
        %v447 = vld [vmem:[%s433 + $0x30] sm:$0xff]
        %v448 = vld [vmem:[%s433 + $0x38] sm:$0xff]
        %v449 = vld [vmem:[%s3] sm:$0xff]
        %v450 = vld [vmem:[%s3 + $0x8] sm:$0xff]
        %v451 = vld [vmem:[%s3 + $0x10] sm:$0xff]
        %v452 = vld [vmem:[%s3 + $0x18] sm:$0xff]
        %v453 = vld [vmem:[%s3 + $0x20] sm:$0xff]
        %v454 = vld [vmem:[%s3 + $0x28] sm:$0xff]
        %v455 = vld [vmem:[%s3 + $0x30] sm:$0xff]
        %v456 = vld [vmem:[%s3 + $0x38] sm:$0xff]
        %v457 = vld [vmem:[%s4] sm:$0x1]
        %v458 = vld [vmem:[%s2] sm:$0xff]
        %v459 = vld [vmem:[%s2 + $0x8] sm:$0xff]
        %v460 = vld [vmem:[%s2 + $0x10] sm:$0xff]
        %v461 = vld [vmem:[%s2 + $0x18] sm:$0xff]
        %v462 = vld [vmem:[%s2 + $0x20] sm:$0xff]
        %v463 = vld [vmem:[%s2 + $0x28] sm:$0xff]
        %v464 = vld [vmem:[%s2 + $0x30] sm:$0xff]
        %v465 = vld [vmem:[%s2 + $0x38] sm:$0xff]
        %vm466 = vcmask 523264
        %v468 = vsel %vm466, %v441, 0
        %v471 = vsel %vm466, %v442, 0
        %v474 = vsel %vm466, %v443, 0
        %v477 = vsel %vm466, %v444, 0
        %v480 = vsel %vm466, %v445, 0
        %v483 = vsel %vm466, %v446, 0
        %v486 = vsel %vm466, %v447, 0
        %v489 = vsel %vm466, %v448, 0
        %491 = vmatpush.msra.mxu0 0.0
        %492 = vmatpush.msra.mxu0 0.0
        %493 = vmatpush.msra.mxu0 0.0
        %494 = vmatpush.msra.mxu0 0.0
        %495 = vmatpush.msra.mxu0 0.0
        %496 = vmatpush.msra.mxu0 0.0
        %497 = vmatpush.msra.mxu0 0.0
        %498 = vmatpush.msra.mxu0 0.0
        %499 = vmatpush.msra.mxu0 %v465
        %500 = vmatpush.msra.mxu0 %v464
        %501 = vmatpush.msra.mxu0 %v463
        %502 = vmatpush.msra.mxu0 %v462
        %503 = vmatpush.msra.mxu0 %v461
        %504 = vmatpush.msra.mxu0 %v460
        %505 = vmatpush.msra.mxu0 %v459
        %506 = vmatpush.msra.mxu0 %v458
        %507 = vmatmul.f32.gmra.mxu0 %v468
        %v508 = vpop.f32.mrf.mxu0
        %v509 = vadd.f32 0.0, %v508
        %510 = vmatmul.f32.gmra.mxu0 %v471
        %v511 = vpop.f32.mrf.mxu0
        %v512 = vadd.f32 0.0, %v511
        %513 = vmatmul.f32.gmra.mxu0 %v474
        %v514 = vpop.f32.mrf.mxu0
        %v515 = vadd.f32 0.0, %v514
        %516 = vmatmul.f32.gmra.mxu0 %v477
        %v517 = vpop.f32.mrf.mxu0
        %v518 = vadd.f32 0.0, %v517
        %519 = vmatmul.f32.gmra.mxu0 %v480
        %v520 = vpop.f32.mrf.mxu0
        %v521 = vadd.f32 0.0, %v520
        %522 = vmatmul.f32.gmra.mxu0 %v483
        %v523 = vpop.f32.mrf.mxu0
        %v524 = vadd.f32 0.0, %v523
        %525 = vmatmul.f32.gmra.mxu0 %v486
        %v526 = vpop.f32.mrf.mxu0
        %v527 = vadd.f32 0.0, %v526
        %528 = vmatmul.f32.gmra.mxu0 %v489
        %v529 = vpop.f32.mrf.mxu0
        %v530 = vadd.f32 0.0, %v529
        %531 = vdwg.mxu0
        %v532 = vld [vmem:[%s394] sm:$0xff]
        %v533 = vld [vmem:[%s394 + $0x8] sm:$0xff]
        %v534 = vld [vmem:[%s394 + $0x10] sm:$0xff]
        %v535 = vld [vmem:[%s394 + $0x18] sm:$0xff]
        %v536 = vld [vmem:[%s394 + $0x20] sm:$0xff]
        %v537 = vld [vmem:[%s394 + $0x28] sm:$0xff]
        %v538 = vld [vmem:[%s394 + $0x30] sm:$0xff]
        %v539 = vld [vmem:[%s394 + $0x38] sm:$0xff]
        %v541 = vsel %vm466, %v532, 0
        %v544 = vsel %vm466, %v533, 0
        %v547 = vsel %vm466, %v534, 0
        %v550 = vsel %vm466, %v535, 0
        %v553 = vsel %vm466, %v536, 0
        %v556 = vsel %vm466, %v537, 0
        %v559 = vsel %vm466, %v538, 0
        %v562 = vsel %vm466, %v539, 0
        %564 = vmatpush.msra.mxu0 0.0
        %565 = vmatpush.msra.mxu0 0.0
        %566 = vmatpush.msra.mxu0 0.0
        %567 = vmatpush.msra.mxu0 0.0
        %568 = vmatpush.msra.mxu0 0.0
        %569 = vmatpush.msra.mxu0 0.0
        %570 = vmatpush.msra.mxu0 0.0
        %571 = vmatpush.msra.mxu0 0.0
        %572 = vmatpush.msra.mxu0 %v456
        %573 = vmatpush.msra.mxu0 %v455
        %574 = vmatpush.msra.mxu0 %v454
        %575 = vmatpush.msra.mxu0 %v453
        %576 = vmatpush.msra.mxu0 %v452
        %577 = vmatpush.msra.mxu0 %v451
        %578 = vmatpush.msra.mxu0 %v450
        %579 = vmatpush.msra.mxu0 %v449
        %580 = vmatmul.f32.gmra.mxu0 %v541
        %v581 = vpop.f32.mrf.mxu0
        %v582 = vadd.f32 0.0, %v581
        %583 = vmatmul.f32.gmra.mxu0 %v544
        %v584 = vpop.f32.mrf.mxu0
        %v585 = vadd.f32 0.0, %v584
        %586 = vmatmul.f32.gmra.mxu0 %v547
        %v587 = vpop.f32.mrf.mxu0
        %v588 = vadd.f32 0.0, %v587
        %589 = vmatmul.f32.gmra.mxu0 %v550
        %v590 = vpop.f32.mrf.mxu0
        %v591 = vadd.f32 0.0, %v590
        %592 = vmatmul.f32.gmra.mxu0 %v553
        %v593 = vpop.f32.mrf.mxu0
        %v594 = vadd.f32 0.0, %v593
        %595 = vmatmul.f32.gmra.mxu0 %v556
        %v596 = vpop.f32.mrf.mxu0
        %v597 = vadd.f32 0.0, %v596
        %598 = vmatmul.f32.gmra.mxu0 %v559
        %v599 = vpop.f32.mrf.mxu0
        %v600 = vadd.f32 0.0, %v599
        %601 = vmatmul.f32.gmra.mxu0 %v562
        %v602 = vpop.f32.mrf.mxu0
        %v603 = vadd.f32 0.0, %v602
        %604 = vdwg.mxu0
        %s605 = scalar_lea.vmem %s2, 64
        %v606 = vld [vmem:[%s605] sm:$0xff]
        %v607 = vld [vmem:[%s605 + $0x8] sm:$0xff]
        %v608 = vld [vmem:[%s605 + $0x10] sm:$0xff]
        %v609 = vld [vmem:[%s605 + $0x18] sm:$0xff]
        %v610 = vld [vmem:[%s605 + $0x20] sm:$0xff]
        %v611 = vld [vmem:[%s605 + $0x28] sm:$0xff]
        %v612 = vld [vmem:[%s605 + $0x30] sm:$0xff]
        %v613 = vld [vmem:[%s605 + $0x38] sm:$0xff]
        %614 = vmatpush.msra.mxu0 0.0
        %615 = vmatpush.msra.mxu0 0.0
        %616 = vmatpush.msra.mxu0 0.0
        %617 = vmatpush.msra.mxu0 0.0
        %618 = vmatpush.msra.mxu0 0.0
        %619 = vmatpush.msra.mxu0 0.0
        %620 = vmatpush.msra.mxu0 0.0
        %621 = vmatpush.msra.mxu0 0.0
        %622 = vmatpush.msra.mxu0 %v613
        %623 = vmatpush.msra.mxu0 %v612
        %624 = vmatpush.msra.mxu0 %v611
        %625 = vmatpush.msra.mxu0 %v610
        %626 = vmatpush.msra.mxu0 %v609
        %627 = vmatpush.msra.mxu0 %v608
        %628 = vmatpush.msra.mxu0 %v607
        %629 = vmatpush.msra.mxu0 %v606
        %630 = vmatmul.f32.gmra.mxu0 %v468
        %v631 = vpop.f32.mrf.mxu0
        %v632 = vadd.f32 0.0, %v631
        %633 = vmatmul.f32.gmra.mxu0 %v471
        %v634 = vpop.f32.mrf.mxu0
        %v635 = vadd.f32 0.0, %v634
        %636 = vmatmul.f32.gmra.mxu0 %v474
        %v637 = vpop.f32.mrf.mxu0
        %v638 = vadd.f32 0.0, %v637
        %639 = vmatmul.f32.gmra.mxu0 %v477
        %v640 = vpop.f32.mrf.mxu0
        %v641 = vadd.f32 0.0, %v640
        %642 = vmatmul.f32.gmra.mxu0 %v480
        %v643 = vpop.f32.mrf.mxu0
        %v644 = vadd.f32 0.0, %v643
        %645 = vmatmul.f32.gmra.mxu0 %v483
        %v646 = vpop.f32.mrf.mxu0
        %v647 = vadd.f32 0.0, %v646
        %648 = vmatmul.f32.gmra.mxu0 %v486
        %v649 = vpop.f32.mrf.mxu0
        %v650 = vadd.f32 0.0, %v649
        %651 = vmatmul.f32.gmra.mxu0 %v489
        %v652 = vpop.f32.mrf.mxu0
        %v653 = vadd.f32 0.0, %v652
        %654 = vdwg.mxu0
        %s655 = scalar_lea.vmem %s394, 64 [#allocation2]
        %v656 = vld [vmem:[%s655] sm:$0xff]
        %v657 = vld [vmem:[%s655 + $0x8] sm:$0xff]
        %v658 = vld [vmem:[%s655 + $0x10] sm:$0xff]
        %v659 = vld [vmem:[%s655 + $0x18] sm:$0xff]
        %v660 = vld [vmem:[%s655 + $0x20] sm:$0xff]
        %v661 = vld [vmem:[%s655 + $0x28] sm:$0xff]
        %v662 = vld [vmem:[%s655 + $0x30] sm:$0xff]
        %v663 = vld [vmem:[%s655 + $0x38] sm:$0xff]
        %v665 = vsel %vm466, %v656, 0
        %v668 = vsel %vm466, %v657, 0
        %v671 = vsel %vm466, %v658, 0
        %v674 = vsel %vm466, %v659, 0
        %v677 = vsel %vm466, %v660, 0
        %v680 = vsel %vm466, %v661, 0
        %v683 = vsel %vm466, %v662, 0
        %v686 = vsel %vm466, %v663, 0
        %688 = vmatpush.msra.mxu0 0.0
        %689 = vmatpush.msra.mxu0 0.0
        %690 = vmatpush.msra.mxu0 0.0
        %691 = vmatpush.msra.mxu0 0.0
        %692 = vmatpush.msra.mxu0 0.0
        %693 = vmatpush.msra.mxu0 0.0
        %694 = vmatpush.msra.mxu0 0.0
        %695 = vmatpush.msra.mxu0 0.0
        %696 = vmatpush.msra.mxu0 %v456
        %697 = vmatpush.msra.mxu0 %v455
        %698 = vmatpush.msra.mxu0 %v454
        %699 = vmatpush.msra.mxu0 %v453
        %700 = vmatpush.msra.mxu0 %v452
        %701 = vmatpush.msra.mxu0 %v451
        %702 = vmatpush.msra.mxu0 %v450
        %703 = vmatpush.msra.mxu0 %v449
        %704 = vmatmul.f32.gmra.mxu0 %v665
        %v705 = vpop.f32.mrf.mxu0
        %v706 = vadd.f32 0.0, %v705
        %707 = vmatmul.f32.gmra.mxu0 %v668
        %v708 = vpop.f32.mrf.mxu0
        %v709 = vadd.f32 0.0, %v708
        %710 = vmatmul.f32.gmra.mxu0 %v671
        %v711 = vpop.f32.mrf.mxu0
        %v712 = vadd.f32 0.0, %v711
        %713 = vmatmul.f32.gmra.mxu0 %v674
        %v714 = vpop.f32.mrf.mxu0
        %v715 = vadd.f32 0.0, %v714
        %716 = vmatmul.f32.gmra.mxu0 %v677
        %v717 = vpop.f32.mrf.mxu0
        %v718 = vadd.f32 0.0, %v717
        %719 = vmatmul.f32.gmra.mxu0 %v680
        %v720 = vpop.f32.mrf.mxu0
        %v721 = vadd.f32 0.0, %v720
        %722 = vmatmul.f32.gmra.mxu0 %v683
        %v723 = vpop.f32.mrf.mxu0
        %v724 = vadd.f32 0.0, %v723
        %725 = vmatmul.f32.gmra.mxu0 %v686
        %v726 = vpop.f32.mrf.mxu0
        %v727 = vadd.f32 0.0, %v726
        %728 = vdwg.mxu0
        %737 = vrot.lane.b32.xlu0 %v582, 32
        %v738 = vpop.permute.xlu0 %737
        %739 = vrot.lane.b32.xlu0 %v585, 32
        %v740 = vpop.permute.xlu0 %739
        %741 = vrot.lane.b32.xlu0 %v588, 32
        %v742 = vpop.permute.xlu0 %741
        %743 = vrot.lane.b32.xlu0 %v591, 32
        %v744 = vpop.permute.xlu0 %743
        %745 = vrot.lane.b32.xlu0 %v594, 32
        %v746 = vpop.permute.xlu0 %745
        %747 = vrot.lane.b32.xlu0 %v597, 32
        %v748 = vpop.permute.xlu0 %747
        %749 = vrot.lane.b32.xlu0 %v600, 32
        %v750 = vpop.permute.xlu0 %749
        %751 = vrot.lane.b32.xlu0 %v603, 32
        %v752 = vpop.permute.xlu0 %751
        %769 = vrot.lane.b32.xlu0 %v632, 64
        %v770 = vpop.permute.xlu0 %769
        %771 = vrot.lane.b32.xlu0 %v635, 64
        %v772 = vpop.permute.xlu0 %771
        %773 = vrot.lane.b32.xlu0 %v638, 64
        %v774 = vpop.permute.xlu0 %773
        %775 = vrot.lane.b32.xlu0 %v641, 64
        %v776 = vpop.permute.xlu0 %775
        %777 = vrot.lane.b32.xlu0 %v644, 64
        %v778 = vpop.permute.xlu0 %777
        %779 = vrot.lane.b32.xlu0 %v647, 64
        %v780 = vpop.permute.xlu0 %779
        %781 = vrot.lane.b32.xlu0 %v650, 64
        %v782 = vpop.permute.xlu0 %781
        %783 = vrot.lane.b32.xlu0 %v653, 64
        %v784 = vpop.permute.xlu0 %783
        %801 = vrot.lane.b32.xlu0 %v706, 96
        %v802 = vpop.permute.xlu0 %801
        %803 = vrot.lane.b32.xlu0 %v709, 96
        %v804 = vpop.permute.xlu0 %803
        %805 = vrot.lane.b32.xlu0 %v712, 96
        %v806 = vpop.permute.xlu0 %805
        %807 = vrot.lane.b32.xlu0 %v715, 96
        %v808 = vpop.permute.xlu0 %807
        %809 = vrot.lane.b32.xlu0 %v718, 96
        %v810 = vpop.permute.xlu0 %809
        %811 = vrot.lane.b32.xlu0 %v721, 96
        %v812 = vpop.permute.xlu0 %811
        %813 = vrot.lane.b32.xlu0 %v724, 96
        %v814 = vpop.permute.xlu0 %813
        %815 = vrot.lane.b32.xlu0 %v727, 96
        %v816 = vpop.permute.xlu0 %815
        %vm825 = vcmask 261120
        %v826 = vsel %vm825, %v509, %v738
        %v827 = vsel %vm825, %v512, %v740
        %v828 = vsel %vm825, %v515, %v742
        %v829 = vsel %vm825, %v518, %v744
        %v830 = vsel %vm825, %v521, %v746
        %v831 = vsel %vm825, %v524, %v748
        %v832 = vsel %vm825, %v527, %v750
        %v833 = vsel %vm825, %v530, %v752
        %v834 = vsel %vm466, %v826, %v770
        %v835 = vsel %vm466, %v827, %v772
        %v836 = vsel %vm466, %v828, %v774
        %v837 = vsel %vm466, %v829, %v776
        %v838 = vsel %vm466, %v830, %v778
        %v839 = vsel %vm466, %v831, %v780
        %v840 = vsel %vm466, %v832, %v782
        %v841 = vsel %vm466, %v833, %v784
        %vm842 = vcmask 785408
        %v843 = vsel %vm842, %v834, %v802
        %v844 = vsel %vm842, %v835, %v804
        %v845 = vsel %vm842, %v836, %v806
        %v846 = vsel %vm842, %v837, %v808
        %v847 = vsel %vm842, %v838, %v810
        %v848 = vsel %vm842, %v839, %v812
        %v849 = vsel %vm842, %v840, %v814
        %v850 = vsel %vm842, %v841, %v816
        %v852 = vperm.slane %v457, 0
        %v854 = vadd.f32 %v843, %v852
        %v855 = vadd.f32 %v844, %v852
        %v856 = vadd.f32 %v845, %v852
        %v857 = vadd.f32 %v846, %v852
        %v858 = vadd.f32 %v847, %v852
        %v859 = vadd.f32 %v848, %v852
        %v860 = vadd.f32 %v849, %v852
        %v861 = vadd.f32 %v850, %v852
        %v862 = vmax.f32 %v854, 0.0
        %v863 = vmax.f32 %v855, 0.0
        %v864 = vmax.f32 %v856, 0.0
        %v865 = vmax.f32 %v857, 0.0
        %v866 = vmax.f32 %v858, 0.0
        %v867 = vmax.f32 %v859, 0.0
        %v868 = vmax.f32 %v860, 0.0
        %v869 = vmax.f32 %v861, 0.0
        %870 = vst [vmem:[%s422] sm:$0xff] %v862
        %871 = vst [vmem:[%s422 + $0x8] sm:$0xff] %v863
        %872 = vst [vmem:[%s422 + $0x10] sm:$0xff] %v864
        %873 = vst [vmem:[%s422 + $0x18] sm:$0xff] %v865
        %874 = vst [vmem:[%s422 + $0x20] sm:$0xff] %v866
        %875 = vst [vmem:[%s422 + $0x28] sm:$0xff] %v867
        %876 = vst [vmem:[%s422 + $0x30] sm:$0xff] %v868
        %877 = vst [vmem:[%s422 + $0x38] sm:$0xff] %v869
        %v878 = vadd.f32 %v862, %v863
        %v879 = vadd.f32 %v878, %v864
        %v880 = vadd.f32 %v879, %v865
        %v881 = vadd.f32 %v880, %v866
        %v882 = vadd.f32 %v881, %v867
        %v883 = vadd.f32 %v882, %v868
        %v884 = vadd.f32 %v883, %v869
        %v885 = vrot.slane %v884, 4
        %v886 = vadd.f32 %v884, %v885
        %v887 = vrot.slane %v886, 2
        %v888 = vadd.f32 %v886, %v887
        %v889 = vrot.slane %v888, 1
        %v890 = vadd.f32 %v888, %v889
        %v891 = vadd.f32 %v890, 0.0
        %v892 = vmul.f32 %v862, %v862
        %v893 = vmul.f32 %v863, %v863
        %v894 = vmul.f32 %v864, %v864
        %v895 = vmul.f32 %v865, %v865
        %v896 = vmul.f32 %v866, %v866
        %v897 = vmul.f32 %v867, %v867
        %v898 = vmul.f32 %v868, %v868
        %v899 = vmul.f32 %v869, %v869
        %v900 = vadd.f32 %v892, %v893
        %v901 = vadd.f32 %v900, %v894
        %v902 = vadd.f32 %v901, %v895
        %v903 = vadd.f32 %v902, %v896
        %v904 = vadd.f32 %v903, %v897
        %v905 = vadd.f32 %v904, %v898
        %v906 = vadd.f32 %v905, %v899
        %v907 = vrot.slane %v906, 4
        %v908 = vadd.f32 %v906, %v907
        %v909 = vrot.slane %v908, 2
        %v910 = vadd.f32 %v908, %v909
        %v911 = vrot.slane %v910, 1
        %v912 = vadd.f32 %v910, %v911
        %v913 = vadd.f32 %v912, 0.0
        %s914 = scalar_lea.vmem %s2, 128
        %v915 = vld [vmem:[%s914] sm:$0xff]
        %v916 = vld [vmem:[%s914 + $0x8] sm:$0xff]
        %v917 = vld [vmem:[%s914 + $0x10] sm:$0xff]
        %v918 = vld [vmem:[%s914 + $0x18] sm:$0xff]
        %v919 = vld [vmem:[%s914 + $0x20] sm:$0xff]
        %v920 = vld [vmem:[%s914 + $0x28] sm:$0xff]
        %v921 = vld [vmem:[%s914 + $0x30] sm:$0xff]
        %v922 = vld [vmem:[%s914 + $0x38] sm:$0xff]
        %923 = vmatpush.msra.mxu0 0.0
        %924 = vmatpush.msra.mxu0 0.0
        %925 = vmatpush.msra.mxu0 0.0
        %926 = vmatpush.msra.mxu0 0.0
        %927 = vmatpush.msra.mxu0 0.0
        %928 = vmatpush.msra.mxu0 0.0
        %929 = vmatpush.msra.mxu0 0.0
        %930 = vmatpush.msra.mxu0 0.0
        %931 = vmatpush.msra.mxu0 %v922
        %932 = vmatpush.msra.mxu0 %v921
        %933 = vmatpush.msra.mxu0 %v920
        %934 = vmatpush.msra.mxu0 %v919
        %935 = vmatpush.msra.mxu0 %v918
        %936 = vmatpush.msra.mxu0 %v917
        %937 = vmatpush.msra.mxu0 %v916
        %938 = vmatpush.msra.mxu0 %v915
        %939 = vmatmul.f32.gmra.mxu0 %v468
        %v940 = vpop.f32.mrf.mxu0
        %v941 = vadd.f32 0.0, %v940
        %942 = vmatmul.f32.gmra.mxu0 %v471
        %v943 = vpop.f32.mrf.mxu0
        %v944 = vadd.f32 0.0, %v943
        %945 = vmatmul.f32.gmra.mxu0 %v474
        %v946 = vpop.f32.mrf.mxu0
        %v947 = vadd.f32 0.0, %v946
        %948 = vmatmul.f32.gmra.mxu0 %v477
        %v949 = vpop.f32.mrf.mxu0
        %v950 = vadd.f32 0.0, %v949
        %951 = vmatmul.f32.gmra.mxu0 %v480
        %v952 = vpop.f32.mrf.mxu0
        %v953 = vadd.f32 0.0, %v952
        %954 = vmatmul.f32.gmra.mxu0 %v483
        %v955 = vpop.f32.mrf.mxu0
        %v956 = vadd.f32 0.0, %v955
        %957 = vmatmul.f32.gmra.mxu0 %v486
        %v958 = vpop.f32.mrf.mxu0
        %v959 = vadd.f32 0.0, %v958
        %960 = vmatmul.f32.gmra.mxu0 %v489
        %v961 = vpop.f32.mrf.mxu0
        %v962 = vadd.f32 0.0, %v961
        %963 = vdwg.mxu0
        %s964 = scalar_lea.vmem %s394, 128 [#allocation2]
        %v965 = vld [vmem:[%s964] sm:$0xff]
        %v966 = vld [vmem:[%s964 + $0x8] sm:$0xff]
        %v967 = vld [vmem:[%s964 + $0x10] sm:$0xff]
        %v968 = vld [vmem:[%s964 + $0x18] sm:$0xff]
        %v969 = vld [vmem:[%s964 + $0x20] sm:$0xff]
        %v970 = vld [vmem:[%s964 + $0x28] sm:$0xff]
        %v971 = vld [vmem:[%s964 + $0x30] sm:$0xff]
        %v972 = vld [vmem:[%s964 + $0x38] sm:$0xff]
        %v974 = vsel %vm466, %v965, 0
        %v977 = vsel %vm466, %v966, 0
        %v980 = vsel %vm466, %v967, 0
        %v983 = vsel %vm466, %v968, 0
        %v986 = vsel %vm466, %v969, 0
        %v989 = vsel %vm466, %v970, 0
        %v992 = vsel %vm466, %v971, 0
        %v995 = vsel %vm466, %v972, 0
        %997 = vmatpush.msra.mxu0 0.0
        %998 = vmatpush.msra.mxu0 0.0
        %999 = vmatpush.msra.mxu0 0.0
        %1000 = vmatpush.msra.mxu0 0.0
        %1001 = vmatpush.msra.mxu0 0.0
        %1002 = vmatpush.msra.mxu0 0.0
        %1003 = vmatpush.msra.mxu0 0.0
        %1004 = vmatpush.msra.mxu0 0.0
        %1005 = vmatpush.msra.mxu0 %v456
        %1006 = vmatpush.msra.mxu0 %v455
        %1007 = vmatpush.msra.mxu0 %v454
        %1008 = vmatpush.msra.mxu0 %v453
        %1009 = vmatpush.msra.mxu0 %v452
        %1010 = vmatpush.msra.mxu0 %v451
        %1011 = vmatpush.msra.mxu0 %v450
        %1012 = vmatpush.msra.mxu0 %v449
        %1013 = vmatmul.f32.gmra.mxu0 %v974
        %v1014 = vpop.f32.mrf.mxu0
        %v1015 = vadd.f32 0.0, %v1014
        %1016 = vmatmul.f32.gmra.mxu0 %v977
        %v1017 = vpop.f32.mrf.mxu0
        %v1018 = vadd.f32 0.0, %v1017
        %1019 = vmatmul.f32.gmra.mxu0 %v980
        %v1020 = vpop.f32.mrf.mxu0
        %v1021 = vadd.f32 0.0, %v1020
        %1022 = vmatmul.f32.gmra.mxu0 %v983
        %v1023 = vpop.f32.mrf.mxu0
        %v1024 = vadd.f32 0.0, %v1023
        %1025 = vmatmul.f32.gmra.mxu0 %v986
        %v1026 = vpop.f32.mrf.mxu0
        %v1027 = vadd.f32 0.0, %v1026
        %1028 = vmatmul.f32.gmra.mxu0 %v989
        %v1029 = vpop.f32.mrf.mxu0
        %v1030 = vadd.f32 0.0, %v1029
        %1031 = vmatmul.f32.gmra.mxu0 %v992
        %v1032 = vpop.f32.mrf.mxu0
        %v1033 = vadd.f32 0.0, %v1032
        %1034 = vmatmul.f32.gmra.mxu0 %v995
        %v1035 = vpop.f32.mrf.mxu0
        %v1036 = vadd.f32 0.0, %v1035
        %1037 = vdwg.mxu0
        %s1038 = scalar_lea.vmem %s2, 192
        %v1039 = vld [vmem:[%s1038] sm:$0xff]
        %v1040 = vld [vmem:[%s1038 + $0x8] sm:$0xff]
        %v1041 = vld [vmem:[%s1038 + $0x10] sm:$0xff]
        %v1042 = vld [vmem:[%s1038 + $0x18] sm:$0xff]
        %v1043 = vld [vmem:[%s1038 + $0x20] sm:$0xff]
        %v1044 = vld [vmem:[%s1038 + $0x28] sm:$0xff]
        %v1045 = vld [vmem:[%s1038 + $0x30] sm:$0xff]
        %v1046 = vld [vmem:[%s1038 + $0x38] sm:$0xff]
        %1047 = vmatpush.msra.mxu0 0.0
        %1048 = vmatpush.msra.mxu0 0.0
        %1049 = vmatpush.msra.mxu0 0.0
        %1050 = vmatpush.msra.mxu0 0.0
        %1051 = vmatpush.msra.mxu0 0.0
        %1052 = vmatpush.msra.mxu0 0.0
        %1053 = vmatpush.msra.mxu0 0.0
        %1054 = vmatpush.msra.mxu0 0.0
        %1055 = vmatpush.msra.mxu0 %v1046
        %1056 = vmatpush.msra.mxu0 %v1045
        %1057 = vmatpush.msra.mxu0 %v1044
        %1058 = vmatpush.msra.mxu0 %v1043
        %1059 = vmatpush.msra.mxu0 %v1042
        %1060 = vmatpush.msra.mxu0 %v1041
        %1061 = vmatpush.msra.mxu0 %v1040
        %1062 = vmatpush.msra.mxu0 %v1039
        %1063 = vmatmul.f32.gmra.mxu0 %v468
        %v1064 = vpop.f32.mrf.mxu0
        %v1065 = vadd.f32 0.0, %v1064
        %1066 = vmatmul.f32.gmra.mxu0 %v471
        %v1067 = vpop.f32.mrf.mxu0
        %v1068 = vadd.f32 0.0, %v1067
        %1069 = vmatmul.f32.gmra.mxu0 %v474
        %v1070 = vpop.f32.mrf.mxu0
        %v1071 = vadd.f32 0.0, %v1070
        %1072 = vmatmul.f32.gmra.mxu0 %v477
        %v1073 = vpop.f32.mrf.mxu0
        %v1074 = vadd.f32 0.0, %v1073
        %1075 = vmatmul.f32.gmra.mxu0 %v480
        %v1076 = vpop.f32.mrf.mxu0
        %v1077 = vadd.f32 0.0, %v1076
        %1078 = vmatmul.f32.gmra.mxu0 %v483
        %v1079 = vpop.f32.mrf.mxu0
        %v1080 = vadd.f32 0.0, %v1079
        %1081 = vmatmul.f32.gmra.mxu0 %v486
        %v1082 = vpop.f32.mrf.mxu0
        %v1083 = vadd.f32 0.0, %v1082
        %1084 = vmatmul.f32.gmra.mxu0 %v489
        %v1085 = vpop.f32.mrf.mxu0
        %v1086 = vadd.f32 0.0, %v1085
        %1087 = vdwg.mxu0
        %s1088 = scalar_lea.vmem %s394, 192 [#allocation2]
        %v1089 = vld [vmem:[%s1088] sm:$0xff]
        %v1090 = vld [vmem:[%s1088 + $0x8] sm:$0xff]
        %v1091 = vld [vmem:[%s1088 + $0x10] sm:$0xff]
        %v1092 = vld [vmem:[%s1088 + $0x18] sm:$0xff]
        %v1093 = vld [vmem:[%s1088 + $0x20] sm:$0xff]
        %v1094 = vld [vmem:[%s1088 + $0x28] sm:$0xff]
        %v1095 = vld [vmem:[%s1088 + $0x30] sm:$0xff]
        %v1096 = vld [vmem:[%s1088 + $0x38] sm:$0xff]
        %v1098 = vsel %vm466, %v1089, 0
        %v1101 = vsel %vm466, %v1090, 0
        %v1104 = vsel %vm466, %v1091, 0
        %v1107 = vsel %vm466, %v1092, 0
        %v1110 = vsel %vm466, %v1093, 0
        %v1113 = vsel %vm466, %v1094, 0
        %v1116 = vsel %vm466, %v1095, 0
        %v1119 = vsel %vm466, %v1096, 0
        %1121 = vmatpush.msra.mxu0 0.0
        %1122 = vmatpush.msra.mxu0 0.0
        %1123 = vmatpush.msra.mxu0 0.0
        %1124 = vmatpush.msra.mxu0 0.0
        %1125 = vmatpush.msra.mxu0 0.0
        %1126 = vmatpush.msra.mxu0 0.0
        %1127 = vmatpush.msra.mxu0 0.0
        %1128 = vmatpush.msra.mxu0 0.0
        %1129 = vmatpush.msra.mxu0 %v456
        %1130 = vmatpush.msra.mxu0 %v455
        %1131 = vmatpush.msra.mxu0 %v454
        %1132 = vmatpush.msra.mxu0 %v453
        %1133 = vmatpush.msra.mxu0 %v452
        %1134 = vmatpush.msra.mxu0 %v451
        %1135 = vmatpush.msra.mxu0 %v450
        %1136 = vmatpush.msra.mxu0 %v449
        %1137 = vmatmul.f32.gmra.mxu0 %v1098
        %v1138 = vpop.f32.mrf.mxu0
        %v1139 = vadd.f32 0.0, %v1138
        %1140 = vmatmul.f32.gmra.mxu0 %v1101
        %v1141 = vpop.f32.mrf.mxu0
        %v1142 = vadd.f32 0.0, %v1141
        %1143 = vmatmul.f32.gmra.mxu0 %v1104
        %v1144 = vpop.f32.mrf.mxu0
        %v1145 = vadd.f32 0.0, %v1144
        %1146 = vmatmul.f32.gmra.mxu0 %v1107
        %v1147 = vpop.f32.mrf.mxu0
        %v1148 = vadd.f32 0.0, %v1147
        %1149 = vmatmul.f32.gmra.mxu0 %v1110
        %v1150 = vpop.f32.mrf.mxu0
        %v1151 = vadd.f32 0.0, %v1150
        %1152 = vmatmul.f32.gmra.mxu0 %v1113
        %v1153 = vpop.f32.mrf.mxu0
        %v1154 = vadd.f32 0.0, %v1153
        %1155 = vmatmul.f32.gmra.mxu0 %v1116
        %v1156 = vpop.f32.mrf.mxu0
        %v1157 = vadd.f32 0.0, %v1156
        %1158 = vmatmul.f32.gmra.mxu0 %v1119
        %v1159 = vpop.f32.mrf.mxu0
        %v1160 = vadd.f32 0.0, %v1159
        %1161 = vdwg.mxu0
        %1170 = vrot.lane.b32.xlu0 %v1015, 32
        %v1171 = vpop.permute.xlu0 %1170
        %1172 = vrot.lane.b32.xlu0 %v1018, 32
        %v1173 = vpop.permute.xlu0 %1172
        %1174 = vrot.lane.b32.xlu0 %v1021, 32
        %v1175 = vpop.permute.xlu0 %1174
        %1176 = vrot.lane.b32.xlu0 %v1024, 32
        %v1177 = vpop.permute.xlu0 %1176
        %1178 = vrot.lane.b32.xlu0 %v1027, 32
        %v1179 = vpop.permute.xlu0 %1178
        %1180 = vrot.lane.b32.xlu0 %v1030, 32
        %v1181 = vpop.permute.xlu0 %1180
        %1182 = vrot.lane.b32.xlu0 %v1033, 32
        %v1183 = vpop.permute.xlu0 %1182
        %1184 = vrot.lane.b32.xlu0 %v1036, 32
        %v1185 = vpop.permute.xlu0 %1184
        %1202 = vrot.lane.b32.xlu0 %v1065, 64
        %v1203 = vpop.permute.xlu0 %1202
        %1204 = vrot.lane.b32.xlu0 %v1068, 64
        %v1205 = vpop.permute.xlu0 %1204
        %1206 = vrot.lane.b32.xlu0 %v1071, 64
        %v1207 = vpop.permute.xlu0 %1206
        %1208 = vrot.lane.b32.xlu0 %v1074, 64
        %v1209 = vpop.permute.xlu0 %1208
        %1210 = vrot.lane.b32.xlu0 %v1077, 64
        %v1211 = vpop.permute.xlu0 %1210
        %1212 = vrot.lane.b32.xlu0 %v1080, 64
        %v1213 = vpop.permute.xlu0 %1212
        %1214 = vrot.lane.b32.xlu0 %v1083, 64
        %v1215 = vpop.permute.xlu0 %1214
        %1216 = vrot.lane.b32.xlu0 %v1086, 64
        %v1217 = vpop.permute.xlu0 %1216
        %1234 = vrot.lane.b32.xlu0 %v1139, 96
        %v1235 = vpop.permute.xlu0 %1234
        %1236 = vrot.lane.b32.xlu0 %v1142, 96
        %v1237 = vpop.permute.xlu0 %1236
        %1238 = vrot.lane.b32.xlu0 %v1145, 96
        %v1239 = vpop.permute.xlu0 %1238
        %1240 = vrot.lane.b32.xlu0 %v1148, 96
        %v1241 = vpop.permute.xlu0 %1240
        %1242 = vrot.lane.b32.xlu0 %v1151, 96
        %v1243 = vpop.permute.xlu0 %1242
        %1244 = vrot.lane.b32.xlu0 %v1154, 96
        %v1245 = vpop.permute.xlu0 %1244
        %1246 = vrot.lane.b32.xlu0 %v1157, 96
        %v1247 = vpop.permute.xlu0 %1246
        %1248 = vrot.lane.b32.xlu0 %v1160, 96
        %v1249 = vpop.permute.xlu0 %1248
        %v1258 = vsel %vm825, %v941, %v1171
        %v1259 = vsel %vm825, %v944, %v1173
        %v1260 = vsel %vm825, %v947, %v1175
        %v1261 = vsel %vm825, %v950, %v1177
        %v1262 = vsel %vm825, %v953, %v1179
        %v1263 = vsel %vm825, %v956, %v1181
        %v1264 = vsel %vm825, %v959, %v1183
        %v1265 = vsel %vm825, %v962, %v1185
        %v1266 = vsel %vm466, %v1258, %v1203
        %v1267 = vsel %vm466, %v1259, %v1205
        %v1268 = vsel %vm466, %v1260, %v1207
        %v1269 = vsel %vm466, %v1261, %v1209
        %v1270 = vsel %vm466, %v1262, %v1211
        %v1271 = vsel %vm466, %v1263, %v1213
        %v1272 = vsel %vm466, %v1264, %v1215
        %v1273 = vsel %vm466, %v1265, %v1217
        %v1274 = vsel %vm842, %v1266, %v1235
        %v1275 = vsel %vm842, %v1267, %v1237
        %v1276 = vsel %vm842, %v1268, %v1239
        %v1277 = vsel %vm842, %v1269, %v1241
        %v1278 = vsel %vm842, %v1270, %v1243
        %v1279 = vsel %vm842, %v1271, %v1245
        %v1280 = vsel %vm842, %v1272, %v1247
        %v1281 = vsel %vm842, %v1273, %v1249
        %v1282 = vadd.f32 %v1274, %v852
        %v1283 = vadd.f32 %v1275, %v852
        %v1284 = vadd.f32 %v1276, %v852
        %v1285 = vadd.f32 %v1277, %v852
        %v1286 = vadd.f32 %v1278, %v852
        %v1287 = vadd.f32 %v1279, %v852
        %v1288 = vadd.f32 %v1280, %v852
        %v1289 = vadd.f32 %v1281, %v852
        %v1290 = vmax.f32 %v1282, 0.0
        %v1291 = vmax.f32 %v1283, 0.0
        %v1292 = vmax.f32 %v1284, 0.0
        %v1293 = vmax.f32 %v1285, 0.0
        %v1294 = vmax.f32 %v1286, 0.0
        %v1295 = vmax.f32 %v1287, 0.0
        %v1296 = vmax.f32 %v1288, 0.0
        %v1297 = vmax.f32 %v1289, 0.0
        %s1298 = scalar_lea.vmem %s422, 64 [#allocation3]
        %1299 = vst [vmem:[%s1298] sm:$0xff] %v1290
        %1300 = vst [vmem:[%s1298 + $0x8] sm:$0xff] %v1291
        %1301 = vst [vmem:[%s1298 + $0x10] sm:$0xff] %v1292
        %1302 = vst [vmem:[%s1298 + $0x18] sm:$0xff] %v1293
        %1303 = vst [vmem:[%s1298 + $0x20] sm:$0xff] %v1294
        %1304 = vst [vmem:[%s1298 + $0x28] sm:$0xff] %v1295
        %1305 = vst [vmem:[%s1298 + $0x30] sm:$0xff] %v1296
        %1306 = vst [vmem:[%s1298 + $0x38] sm:$0xff] %v1297
        %v1307 = vadd.f32 %v1290, %v1291
        %v1308 = vadd.f32 %v1307, %v1292
        %v1309 = vadd.f32 %v1308, %v1293
        %v1310 = vadd.f32 %v1309, %v1294
        %v1311 = vadd.f32 %v1310, %v1295
        %v1312 = vadd.f32 %v1311, %v1296
        %v1313 = vadd.f32 %v1312, %v1297
        %v1314 = vrot.slane %v1313, 4
        %v1315 = vadd.f32 %v1313, %v1314
        %v1316 = vrot.slane %v1315, 2
        %v1317 = vadd.f32 %v1315, %v1316
        %v1318 = vrot.slane %v1317, 1
        %v1319 = vadd.f32 %v1317, %v1318
        %v1320 = vadd.f32 %v891, %v1319
        %v1321 = vmul.f32 %v1290, %v1290
        %v1322 = vmul.f32 %v1291, %v1291
        %v1323 = vmul.f32 %v1292, %v1292
        %v1324 = vmul.f32 %v1293, %v1293
        %v1325 = vmul.f32 %v1294, %v1294
        %v1326 = vmul.f32 %v1295, %v1295
        %v1327 = vmul.f32 %v1296, %v1296
        %v1328 = vmul.f32 %v1297, %v1297
        %v1329 = vadd.f32 %v1321, %v1322
        %v1330 = vadd.f32 %v1329, %v1323
        %v1331 = vadd.f32 %v1330, %v1324
        %v1332 = vadd.f32 %v1331, %v1325
        %v1333 = vadd.f32 %v1332, %v1326
        %v1334 = vadd.f32 %v1333, %v1327
        %v1335 = vadd.f32 %v1334, %v1328
        %v1336 = vrot.slane %v1335, 4
        %v1337 = vadd.f32 %v1335, %v1336
        %v1338 = vrot.slane %v1337, 2
        %v1339 = vadd.f32 %v1337, %v1338
        %v1340 = vrot.slane %v1339, 1
        %v1341 = vadd.f32 %v1339, %v1340
        %v1342 = vadd.f32 %v913, %v1341
        %vm1343 = vcmask 1040384
        %v1344 = vsel %vm1343, %v1320, %v1342
        %vm1345 = vcmask 1041408
        %v1346 = vsel %vm1345, %v1344, 0.0
        %1347 = vst [vmem:[%s440] sm:$0xff] %v1346
        %s1348 = sand.u32 %s141, 1
        %s1349 = sand.u32 %s141, 1
        %s1350 = smul.addr %s1349, 128
        %s1351 = scalar_lea.vmem [#allocation3], %s1350
        %p1352 = scmp.lt.s32.totalorder %s18, 1
        %s1353 = scalar_select %p1352, %s18, 1
        %s1354 = smul.addr %s1353, 8
        %s1355 = scalar_lea.vmem %s6, %s1354
        // Predicated region
        $region79: #{unet_up_block.1} parent=73 // pred_check
          %p1356 = pneg %p151
        $region80: #{unet_up_block.1} parent=73 // pred_check_branch
          %1358 = sbr.rel (%p1356) target = $region82
        $region81: #{unet_up_block.1} parent=73 // pred_region
          %s1359 = smul.u32 8, %s18
          %s1360 = smul.addr %s1359, 8
          %s1361 = scalar_lea.vmem %s5, %s1360
          // Predicated region
          $region83: #{unet_up_block.1} parent=81 // pred_check
            _
          $region84: #{unet_up_block.1} parent=81 // pred_check_branch
            %1363 = sbr.rel (0) target = $region86
          $region85: #{unet_up_block.1} parent=81 // pred_region
            // Predicated region
            $region87: #{unet_up_block.1} parent=85 // pred_check
              _
            $region88: #{unet_up_block.1} parent=85 // pred_check_branch
              %1365 = sbr.rel (0) target = $region90
            $region89: #{unet_up_block.1} parent=85 // pred_region
              // Predicated region
              $region102: #{unet_up_block.1} parent=89 // pred_check
                _
              $region103: #{unet_up_block.1} parent=89 // pred_check_branch
                %1411 = sbr.rel (0) target = $region105
              $region104: #{unet_up_block.1} parent=89 // pred_region
                loop: start=0, step=1, limit=1
                $region106: #{unet_up_block.1} parent=104 // loop_pre_header
                  _
                $region107: #{unet_up_block.1} parent=104 // loop_header
                  %s1413 = sphi 0, %s1417
                  %p1414 = scmp.ge.s32.totalorder %s1413, 1
                  %s1418 = sphi %s1351, %s1351
                  %s1419 = sphi %s1361, %s1361
                $region108: #{unet_up_block.1} parent=104 // loop_header_branch
                  %1416 = sbr.rel (%p1414) target = $region112
                $region109: #{unet_up_block.1} parent=104 // loop_body
                  %v1420 = vld [vmem:[%s1418] sm:$0xff]
                  %1421 = vst [vmem:[%s1419] sm:$0xff] %v1420
                  %v1422 = vld [vmem:[%s1418 + $0x8] sm:$0xff]
                  %1423 = vst [vmem:[%s1419 + $0x8] sm:$0xff] %v1422
                  %v1424 = vld [vmem:[%s1418 + $0x10] sm:$0xff]
                  %1425 = vst [vmem:[%s1419 + $0x10] sm:$0xff] %v1424
                  %v1426 = vld [vmem:[%s1418 + $0x18] sm:$0xff]
                  %1427 = vst [vmem:[%s1419 + $0x18] sm:$0xff] %v1426
                  %v1428 = vld [vmem:[%s1418 + $0x20] sm:$0xff]
                  %1429 = vst [vmem:[%s1419 + $0x20] sm:$0xff] %v1428
                  %v1430 = vld [vmem:[%s1418 + $0x28] sm:$0xff]
                  %1431 = vst [vmem:[%s1419 + $0x28] sm:$0xff] %v1430
                  %v1432 = vld [vmem:[%s1418 + $0x30] sm:$0xff]
                  %1433 = vst [vmem:[%s1419 + $0x30] sm:$0xff] %v1432
                  %v1434 = vld [vmem:[%s1418 + $0x38] sm:$0xff]
                  %1435 = vst [vmem:[%s1419 + $0x38] sm:$0xff] %v1434
                  %v1436 = vld [vmem:[%s1418 + $0x40] sm:$0xff]
                  %1437 = vst [vmem:[%s1419 + $0x80] sm:$0xff] %v1436
                  %v1438 = vld [vmem:[%s1418 + $0x48] sm:$0xff]
                  %1439 = vst [vmem:[%s1419 + $0x88] sm:$0xff] %v1438
                  %v1440 = vld [vmem:[%s1418 + $0x50] sm:$0xff]
                  %1441 = vst [vmem:[%s1419 + $0x90] sm:$0xff] %v1440
                  %v1442 = vld [vmem:[%s1418 + $0x58] sm:$0xff]
                  %1443 = vst [vmem:[%s1419 + $0x98] sm:$0xff] %v1442
                  %v1444 = vld [vmem:[%s1418 + $0x60] sm:$0xff]
                  %1445 = vst [vmem:[%s1419 + $0xa0] sm:$0xff] %v1444
                  %v1446 = vld [vmem:[%s1418 + $0x68] sm:$0xff]
                  %1447 = vst [vmem:[%s1419 + $0xa8] sm:$0xff] %v1446
                  %v1448 = vld [vmem:[%s1418 + $0x70] sm:$0xff]
                  %1449 = vst [vmem:[%s1419 + $0xb0] sm:$0xff] %v1448
                  %v1450 = vld [vmem:[%s1418 + $0x78] sm:$0xff]
                  %1451 = vst [vmem:[%s1419 + $0xb8] sm:$0xff] %v1450
                $region110: #{unet_up_block.1} parent=104 // loop_footer
                  %s1417 = sadd.s32 1, %s1413
                $region111: #{unet_up_block.1} parent=104 // loop_footer_branch
                  %1412 = sbr.rel target = $region107
                $region112: #{unet_up_block.1} parent=104 // loop_exit
                  _
              $region105: #{unet_up_block.1} parent=89 // pred_fallthru
                _
              // Predicated region
              $region113: #{unet_up_block.1} parent=89 // pred_check
                _
              $region114: #{unet_up_block.1} parent=89 // pred_check_branch
                %1453 = sbr.rel target = $region116
              $region115: #{unet_up_block.1} parent=89 // pred_region
                _
              $region116: #{unet_up_block.1} parent=89 // pred_fallthru
                _
            $region90: #{unet_up_block.1} parent=85 // pred_fallthru
              _
            // Predicated region
            $region91: #{unet_up_block.1} parent=85 // pred_check
              _
            $region92: #{unet_up_block.1} parent=85 // pred_check_branch
              %1367 = sbr.rel target = $region94
            $region93: #{unet_up_block.1} parent=85 // pred_region
              %s1369 = ssub.s32 256, 1
              loop: start=0, step=1, limit=1
              $region95: #{unet_up_block.1} parent=93 // loop_pre_header
                _
              $region96: #{unet_up_block.1} parent=93 // loop_header
                %s1371 = sphi 0, %s1375
                %p1372 = scmp.ge.s32.totalorder %s1371, 1
                %s1376 = sphi %s1351, %s1351
                %s1377 = sphi %s1361, %s1361
              $region97: #{unet_up_block.1} parent=93 // loop_header_branch
                %1374 = sbr.rel (%p1372) target = $region101
              $region98: #{unet_up_block.1} parent=93 // loop_body
                %v1378 = vld [vmem:[%s1376] sm:%s1369]
                %1379 = vst [vmem:[%s1377] sm:%s1369] %v1378
                %v1380 = vld [vmem:[%s1376 + $0x8] sm:%s1369]
                %1381 = vst [vmem:[%s1377 + $0x8] sm:%s1369] %v1380
                %v1382 = vld [vmem:[%s1376 + $0x10] sm:%s1369]
                %1383 = vst [vmem:[%s1377 + $0x10] sm:%s1369] %v1382
                %v1384 = vld [vmem:[%s1376 + $0x18] sm:%s1369]
                %1385 = vst [vmem:[%s1377 + $0x18] sm:%s1369] %v1384
                %v1386 = vld [vmem:[%s1376 + $0x20] sm:%s1369]
                %1387 = vst [vmem:[%s1377 + $0x20] sm:%s1369] %v1386
                %v1388 = vld [vmem:[%s1376 + $0x28] sm:%s1369]
                %1389 = vst [vmem:[%s1377 + $0x28] sm:%s1369] %v1388
                %v1390 = vld [vmem:[%s1376 + $0x30] sm:%s1369]
                %1391 = vst [vmem:[%s1377 + $0x30] sm:%s1369] %v1390
                %v1392 = vld [vmem:[%s1376 + $0x38] sm:%s1369]
                %1393 = vst [vmem:[%s1377 + $0x38] sm:%s1369] %v1392
                %v1394 = vld [vmem:[%s1376 + $0x40] sm:%s1369]
                %1395 = vst [vmem:[%s1377 + $0x80] sm:%s1369] %v1394
                %v1396 = vld [vmem:[%s1376 + $0x48] sm:%s1369]
                %1397 = vst [vmem:[%s1377 + $0x88] sm:%s1369] %v1396
                %v1398 = vld [vmem:[%s1376 + $0x50] sm:%s1369]
                %1399 = vst [vmem:[%s1377 + $0x90] sm:%s1369] %v1398
                %v1400 = vld [vmem:[%s1376 + $0x58] sm:%s1369]
                %1401 = vst [vmem:[%s1377 + $0x98] sm:%s1369] %v1400
                %v1402 = vld [vmem:[%s1376 + $0x60] sm:%s1369]
                %1403 = vst [vmem:[%s1377 + $0xa0] sm:%s1369] %v1402
                %v1404 = vld [vmem:[%s1376 + $0x68] sm:%s1369]
                %1405 = vst [vmem:[%s1377 + $0xa8] sm:%s1369] %v1404
                %v1406 = vld [vmem:[%s1376 + $0x70] sm:%s1369]
                %1407 = vst [vmem:[%s1377 + $0xb0] sm:%s1369] %v1406
                %v1408 = vld [vmem:[%s1376 + $0x78] sm:%s1369]
                %1409 = vst [vmem:[%s1377 + $0xb8] sm:%s1369] %v1408
              $region99: #{unet_up_block.1} parent=93 // loop_footer
                %s1375 = sadd.s32 1, %s1371
              $region100: #{unet_up_block.1} parent=93 // loop_footer_branch
                %1370 = sbr.rel target = $region96
              $region101: #{unet_up_block.1} parent=93 // loop_exit
                _
            $region94: #{unet_up_block.1} parent=85 // pred_fallthru
              _
          $region86: #{unet_up_block.1} parent=81 // pred_fallthru
            _
          %1454 = vnop
        $region82: #{unet_up_block.1} parent=73 // pred_fallthru
          _
        // Predicated region
        $region117: #{unet_up_block.1} parent=73 // pred_check
          %p1455 = pneg %p177
        $region118: #{unet_up_block.1} parent=73 // pred_check_branch
          %1457 = sbr.rel (%p1455) target = $region120
        $region119: #{unet_up_block.1} parent=73 // pred_region
          _
        $region120: #{unet_up_block.1} parent=73 // pred_fallthru
          _
      $region74: #{unet_up_block.1} parent=5 // pred_fallthru
        _
      %p1458 = scmp.le.s32.totalorder 2, %s13
      // Predicated region
      $region121: #{unet_up_block.1} parent=5 // pred_check
        %p1459 = pneg %p1458
      $region122: #{unet_up_block.1} parent=5 // pred_check_branch
        %1461 = sbr.rel (%p1459) target = $region124
      $region123: #{unet_up_block.1} parent=5 // pred_region
        %s1462 = ssub.s32 %s13, 2
        // Predicated region
        $region125: #{unet_up_block.1} parent=123 // pred_check
          %p1463 = pneg %p157
        $region126: #{unet_up_block.1} parent=123 // pred_check_branch
          %1465 = sbr.rel (%p1463) target = $region128
        $region127: #{unet_up_block.1} parent=123 // pred_region
          %s1466 = sand.u32 %s142, 1
          %s1467 = sand.u32 %s142, 1
          %s1468 = smul.addr %s1467, 128
          %s1469 = scalar_lea.vmem [#allocation3], %s1468
        $region128: #{unet_up_block.1} parent=123 // pred_fallthru
          _
        // Predicated region
        $region129: #{unet_up_block.1} parent=123 // pred_check
          %p1470 = pneg %p183
        $region130: #{unet_up_block.1} parent=123 // pred_check_branch
          %1472 = sbr.rel (%p1470) target = $region132
        $region131: #{unet_up_block.1} parent=123 // pred_region
          %p1473 = scmp.lt.s32.totalorder %s19, 1
          %s1474 = scalar_select %p1473, %s19, 1
          %s1475 = smul.addr %s1474, 8
          %s1476 = scalar_lea.vmem %s6, %s1475
        $region132: #{unet_up_block.1} parent=123 // pred_fallthru
          _
      $region124: #{unet_up_block.1} parent=5 // pred_fallthru
        _
    $region6: #{unet_up_block.1} parent=1 // loop_footer
      %s17 = sadd.s32 1, %s13
    $region7: #{unet_up_block.1} parent=1 // loop_footer_branch
      %12 = sbr.rel target = $region3
    $region8: #{unet_up_block.1} parent=1 // loop_exit
      _

</llo_original>
